<compile_context>
chip_gen: v5e
topology: v5e:2x2
jax: 0.10.0
libtpu: 0.0.40
codegen_flags: <defaults>
</compile_context>

<pallas_src>
import functools

import jax
import jax.numpy as jnp
import numpy as np
from jax.experimental import pallas as pl
from jax.experimental.pallas import tpu as pltpu


# ----------------------------------------------------------------------------
# Fused forward kernel: embedding gather + all LSTM layers + output head.
# ----------------------------------------------------------------------------
def _fused_decoder_kernel(*refs, num_layers, T, Bp, H, V):
    f32 = jnp.float32
    TB = T * Bp
    G = 4 * H

    # ---- unpack refs ---------------------------------------------------------
    trg_ref, z_ref, tab_hi_ref, tab_lo_ref, w_ih_z0_ref = refs[:5]
    p = 5
    layer_refs = [(None, refs[p], refs[p + 1])]          # layer 0: (w_ih, w_hh, bias)
    p += 2
    for _ in range(1, num_layers):
        layer_refs.append((refs[p], refs[p + 1], refs[p + 2]))
        p += 3
    w1_ref, b1_ref, w2_ref, b2_ref = refs[p:p + 4]
    p += 4
    out_ref, h_out_ref, c_out_ref = refs[p:p + 3]
    y_sc = refs[p + 3]                                   # VMEM (TB, H): top-layer outputs

    # ---- layer-0 time-invariant gate terms (in-kernel embedding gather) ------
    tok = trg_ref[...]                                            # (TB, 1) int32
    iota_v = jax.lax.broadcasted_iota(jnp.int32, (TB, V), 1)
    onehot = jnp.where(tok == iota_v, 1.0, 0.0).astype(f32)       # (TB, V)
    # hi/lo split keeps the gather exact under the MXU's bf16 input truncation.
    gates0_emb = (jnp.dot(onehot, tab_hi_ref[...], preferred_element_type=f32)
                  + jnp.dot(onehot, tab_lo_ref[...], preferred_element_type=f32))
    zb0 = (jnp.dot(z_ref[...], w_ih_z0_ref[...], preferred_element_type=f32)
           + layer_refs[0][2][...])                               # (Bp, G), reused over T

    # Hoist weight loads / bias broadcasts out of the recurrence.
    w_hh = [layer_refs[l][1][...] for l in range(num_layers)]
    w_ih = [None] + [layer_refs[l][0][...] for l in range(1, num_layers)]
    bias = [None] + [jnp.broadcast_to(layer_refs[l][2][...], (Bp, G))
                     for l in range(1, num_layers)]

    def sigmoid(x):          # explicit form: avoids depending on a logistic lowering rule
        return 1.0 / (1.0 + jnp.exp(-x))

    def lstm_cell(gx, h, c, whh):
        g = gx + jnp.dot(h, whh, preferred_element_type=f32)      # (Bp, G)
        i_g = sigmoid(g[:, 0 * H:1 * H])                          # PyTorch gate order i,f,g,o
        f_g = sigmoid(g[:, 1 * H:2 * H])
        g_g = jnp.tanh(g[:, 2 * H:3 * H])
        o_g = sigmoid(g[:, 3 * H:4 * H])
        c = f_g * c + i_g * g_g
        h = o_g * jnp.tanh(c)
        return h, c

    zeros = jnp.zeros((Bp, H), f32)
    h = [zeros] * num_layers
    c = [zeros] * num_layers
    outs = [[None] * T for _ in range(num_layers)]

    # Wavefront schedule: at wave w run layer l's step t = w - l.  Everything is
    # unrolled into one basic block with register (not VMEM) hand-off between
    # layers, so the per-layer recurrence chains can overlap.
    for wave in range(T + num_layers - 1):
        for l in range(num_layers):
            t = wave - l
            if t < 0 or t >= T:
                continue
            if l == 0:
                gx = gates0_emb[t * Bp:(t + 1) * Bp, :] + zb0
            else:
                gx = jnp.dot(outs[l - 1][t], w_ih[l],
                             preferred_element_type=f32) + bias[l]
            h[l], c[l] = lstm_cell(gx, h[l], c[l], w_hh[l])
            outs[l][t] = h[l]
            if l == num_layers - 1:
                y_sc[t * Bp:(t + 1) * Bp, :] = h[l]               # full sublane-group store

    for l in range(num_layers):
        h_out_ref[l] = h[l]
        c_out_ref[l] = c[l]

    # ---- output head (tanh(linear1) -> tied linear2 -> log_softmax), batched --
    y = y_sc[...]                                                 # (TB, H)
    e = jnp.tanh(jnp.dot(y, w1_ref[...], preferred_element_type=f32) + b1_ref[...])
    logits = jnp.dot(e, w2_ref[...], preferred_element_type=f32) + b2_ref[...]
    m = jnp.max(logits, axis=-1, keepdims=True)
    s = logits - m
    lse = jnp.log(jnp.sum(jnp.exp(s), axis=-1, keepdims=True))
    out_ref[...] = s - lse


# ----------------------------------------------------------------------------
# Forward wrapper (jit-compiled; only pad/slice glue remains outside the kernel).
# ----------------------------------------------------------------------------
def dummy_decoder_forward(params, trg, z):
    """trg: (T, B) int32, z: (B, latent). Returns (log_probs (T,B,V), (h, c))."""
    emb = params["embedding"]                       # (V, E)
    V, E = emb.shape
    T, B = trg.shape
    L = z.shape[1]
    lstm = params["lstm"]
    num_layers = len(lstm)
    H = lstm[0]["w_hh_t"].shape[0]

    Bp = ((B + 7) // 8) * 8                         # sublane-pad batch (f32 sublanes = 8)

    # Layer-0 input projection split: per-token gate table (weight-only, constant
    # under jit) + z projection.  hi/lo split -> exact in-kernel one-hot gather.
    w_ih0 = lstm[0]["w_ih_t"]                       # (E + L, 4H)
    tab = jnp.dot(emb, w_ih0[:E], preferred_element_type=jnp.float32)   # (V, 4H)
    tab_hi = tab.astype(jnp.bfloat16).astype(jnp.float32)
    tab_lo = tab - tab_hi
    w_ih_z0 = w_ih0[E:]                             # (L, 4H)

    trg_pad = jnp.zeros((T, Bp), jnp.int32).at[:, :B].set(trg.astype(jnp.int32))
    trg_pad = trg_pad.reshape(T * Bp, 1)
    z_pad = jnp.zeros((Bp, L), jnp.float32).at[:B, :].set(z.astype(jnp.float32))

    in_arrays = [trg_pad, z_pad, tab_hi, tab_lo, w_ih_z0,
                 lstm[0]["w_hh_t"], lstm[0]["bias"]]
    for lw in lstm[1:]:
        in_arrays += [lw["w_ih_t"], lw["w_hh_t"], lw["bias"]]
    in_arrays += [params["w1_t"], params["b1"], params["w2_t"], params["b2"]]

    in_specs = [pl.BlockSpec(a.shape, lambda i, nd=a.ndim: (0,) * nd)
                for a in in_arrays]

    kernel = functools.partial(_fused_decoder_kernel,
                               num_layers=num_layers, T=T, Bp=Bp, H=H, V=V)

    out, h_f, c_f = pl.pallas_call(
        kernel,
        out_shape=(
            jax.ShapeDtypeStruct((T * Bp, V), jnp.float32),
            jax.ShapeDtypeStruct((num_layers, Bp, H), jnp.float32),
            jax.ShapeDtypeStruct((num_layers, Bp, H), jnp.float32),
        ),
        grid_spec=pltpu.PrefetchScalarGridSpec(
            num_scalar_prefetch=0,
            grid=(1,),
            in_specs=in_specs,
            out_specs=[
                pl.BlockSpec((T * Bp, V), lambda i: (0, 0)),
                pl.BlockSpec((num_layers, Bp, H), lambda i: (0, 0, 0)),
                pl.BlockSpec((num_layers, Bp, H), lambda i: (0, 0, 0)),
            ],
            scratch_shapes=[pltpu.VMEM((T * Bp, H), jnp.float32)],
        ),
        compiler_params=pltpu.CompilerParams(
            dimension_semantics=("arbitrary",)),    # single step; recurrence is serial
    )(*in_arrays)

    log_probs = out.reshape(T, Bp, V)[:, :B, :]
    return log_probs, (h_f[:, :B, :], c_f[:, :B, :])


# ----------------------------------------------------------------------------
# Deterministic parameter init (shapes from DummyDecoder.__init__).
# ----------------------------------------------------------------------------
def init_params(key, vocab_size, embed_size, hidden_size, latent_size, num_layers):
    keys = jax.random.split(key, 4 + 4 * num_layers)
    ki = iter(keys)

    def u(k, shape, scale):
        return jax.random.uniform(k, shape, jnp.float32, -scale, scale)

    # embedding: (rand - 0.5) * 2  -> U(-1, 1)
    emb = u(next(ki), (vocab_size, embed_size), 1.0)

    lstm = []
    in_size = embed_size + latent_size
    k_h = 1.0 / np.sqrt(hidden_size)
    for _ in range(num_layers):
        w_ih = u(next(ki), (4 * hidden_size, in_size), k_h)       # torch layout
        w_hh = u(next(ki), (4 * hidden_size, hidden_size), k_h)
        b_ih = u(next(ki), (4 * hidden_size,), k_h)
        b_hh = u(next(ki), (4 * hidden_size,), k_h)
        lstm.append(dict(
            w_ih_t=w_ih.T,                                        # (In, 4H)
            w_hh_t=w_hh.T,                                        # (H, 4H)
            bias=(b_ih + b_hh)[None, :],                          # (1, 4H)
        ))
        in_size = hidden_size

    w1 = u(next(ki), (embed_size, hidden_size), 1.0 / np.sqrt(hidden_size))
    b1 = u(next(ki), (embed_size,), 1.0 / np.sqrt(hidden_size))
    # linear2.weight is tied to embedding.weight -> (V, E); own bias.
    b2 = u(next(ki), (vocab_size,), 1.0 / np.sqrt(embed_size))

    return dict(
        embedding=emb,
        lstm=lstm,
        w1_t=w1.T, b1=b1[None, :],            # (H, E), (1, E)
        w2_t=emb.T, b2=b2[None, :],           # (E, V), (1, V)  -- weight tying
    )


# ----------------------------------------------------------------------------
# Pure-JAX reference (same math) for a correctness spot-check.
# ----------------------------------------------------------------------------
def reference_forward(params, trg, z):
    emb_w = params["embedding"]
    x = jnp.take(emb_w, trg, axis=0)
    T, B = trg.shape
    x = jnp.concatenate([x, jnp.broadcast_to(z[None], (T,) + z.shape)], axis=2)

    layer_in = x
    hs, cs = [], []
    for lw in params["lstm"]:
        H = lw["w_hh_t"].shape[0]
        h = jnp.zeros((B, H), jnp.float32)
        c = jnp.zeros((B, H), jnp.float32)

        def step(carry, xt, lw=lw, H=H):
            h, c = carry
            g = xt @ lw["w_ih_t"] + h @ lw["w_hh_t"] + lw["bias"]
            i = jax.nn.sigmoid(g[:, :H])
            f = jax.nn.sigmoid(g[:, H:2 * H])
            gg = jnp.tanh(g[:, 2 * H:3 * H])
            o = jax.nn.sigmoid(g[:, 3 * H:])
            c = f * c + i * gg
            h = o * jnp.tanh(c)
            return (h, c), h

        (h, c), y = jax.lax.scan(step, (h, c), layer_in)
        hs.append(h); cs.append(c)
        layer_in = y

    e = jnp.tanh(layer_in @ params["w1_t"] + params["b1"])
    logits = e @ params["w2_t"] + params["b2"]
    logp = jax.nn.log_softmax(logits, axis=2)
    return logp, (jnp.stack(hs, 0), jnp.stack(cs, 0))


if __name__ == "__main__":
    vocab_size, embed_size, hidden_size, latent_size, num_layers = 32, 16, 32, 8, 2
    trg_len, batch = 8, 4

    key = jax.random.PRNGKey(0)
    kp, kt, kz = jax.random.split(key, 3)
    params = init_params(kp, vocab_size, embed_size, hidden_size,
                         latent_size, num_layers)

    trg = jax.random.randint(kt, (trg_len, batch), 0, vocab_size, jnp.int32)
    z = jax.random.normal(kz, (batch, latent_size), jnp.float32)

    fwd = jax.jit(dummy_decoder_forward)
    log_probs, (h, c) = fwd(params, trg, z)
    jax.block_until_ready((log_probs, h, c))

    ref_lp, (ref_h, ref_c) = reference_forward(params, trg, z)
    np.testing.assert_allclose(np.asarray(log_probs), np.asarray(ref_lp),
                               atol=2e-4, rtol=2e-4)
    np.testing.assert_allclose(np.asarray(h), np.asarray(ref_h), atol=2e-4, rtol=2e-4)
    np.testing.assert_allclose(np.asarray(c), np.asarray(ref_c), atol=2e-4, rtol=2e-4)

    assert log_probs.shape == (trg_len, batch, vocab_size)
    assert h.shape == (num_layers, batch, hidden_size)
    assert c.shape == (num_layers, batch, hidden_size)

    print("KERNEL_OK")
</pallas_src>

<mosaic_0001>
module attributes {stable_mosaic.version = 11 : i64} {
  func.func @_fused_decoder_kernel(%arg0: i32, %arg1: memref<64x1xi32, #tpu.memory_space<vmem>>, %arg2: memref<8x8xf32, #tpu.memory_space<vmem>>, %arg3: memref<32x128xf32, #tpu.memory_space<vmem>>, %arg4: memref<32x128xf32, #tpu.memory_space<vmem>>, %arg5: memref<8x128xf32, #tpu.memory_space<vmem>>, %arg6: memref<32x128xf32, #tpu.memory_space<vmem>>, %arg7: memref<1x128xf32, #tpu.memory_space<vmem>>, %arg8: memref<32x128xf32, #tpu.memory_space<vmem>>, %arg9: memref<32x128xf32, #tpu.memory_space<vmem>>, %arg10: memref<1x128xf32, #tpu.memory_space<vmem>>, %arg11: memref<32x16xf32, #tpu.memory_space<vmem>>, %arg12: memref<1x16xf32, #tpu.memory_space<vmem>>, %arg13: memref<16x32xf32, #tpu.memory_space<vmem>>, %arg14: memref<1x32xf32, #tpu.memory_space<vmem>>, %arg15: memref<64x32xf32, #tpu.memory_space<vmem>>, %arg16: memref<2x8x32xf32, #tpu.memory_space<vmem>>, %arg17: memref<2x8x32xf32, #tpu.memory_space<vmem>>, %arg18: memref<64x32xf32, #tpu.memory_space<vmem>>) attributes {dimension_semantics = [#tpu.dimension_semantics<arbitrary>], iteration_bounds = array<i64: 1>, scalar_prefetch = 0 : i64, scratch_operands = 1 : i64, tpu.core_type = #tpu.core_type<tc>, window_params = [{pipeline_mode = #tpu.pipeline_mode<synchronous>, transform_indices = @transform_0, window_bounds = array<i64: 64, 1>}, {pipeline_mode = #tpu.pipeline_mode<synchronous>, transform_indices = @transform_1, window_bounds = array<i64: 8, 8>}, {pipeline_mode = #tpu.pipeline_mode<synchronous>, transform_indices = @transform_2, window_bounds = array<i64: 32, 128>}, {pipeline_mode = #tpu.pipeline_mode<synchronous>, transform_indices = @transform_3, window_bounds = array<i64: 32, 128>}, {pipeline_mode = #tpu.pipeline_mode<synchronous>, transform_indices = @transform_4, window_bounds = array<i64: 8, 128>}, {pipeline_mode = #tpu.pipeline_mode<synchronous>, transform_indices = @transform_5, window_bounds = array<i64: 32, 128>}, {pipeline_mode = #tpu.pipeline_mode<synchronous>, transform_indices = @transform_6, window_bounds = array<i64: 1, 128>}, {pipeline_mode = #tpu.pipeline_mode<synchronous>, transform_indices = @transform_7, window_bounds = array<i64: 32, 128>}, {pipeline_mode = #tpu.pipeline_mode<synchronous>, transform_indices = @transform_8, window_bounds = array<i64: 32, 128>}, {pipeline_mode = #tpu.pipeline_mode<synchronous>, transform_indices = @transform_9, window_bounds = array<i64: 1, 128>}, {pipeline_mode = #tpu.pipeline_mode<synchronous>, transform_indices = @transform_10, window_bounds = array<i64: 32, 16>}, {pipeline_mode = #tpu.pipeline_mode<synchronous>, transform_indices = @transform_11, window_bounds = array<i64: 1, 16>}, {pipeline_mode = #tpu.pipeline_mode<synchronous>, transform_indices = @transform_12, window_bounds = array<i64: 16, 32>}, {pipeline_mode = #tpu.pipeline_mode<synchronous>, transform_indices = @transform_13, window_bounds = array<i64: 1, 32>}, {pipeline_mode = #tpu.pipeline_mode<synchronous>, transform_indices = @transform_14, window_bounds = array<i64: 64, 32>}, {pipeline_mode = #tpu.pipeline_mode<synchronous>, transform_indices = @transform_15, window_bounds = array<i64: 2, 8, 32>}, {pipeline_mode = #tpu.pipeline_mode<synchronous>, transform_indices = @transform_16, window_bounds = array<i64: 2, 8, 32>}]} {
    %c0 = arith.constant 0 : index
    %c0_0 = arith.constant 0 : index
    %0 = vector.load %arg1[%c0, %c0_0] : memref<64x1xi32, #tpu.memory_space<vmem>>, vector<64x1xi32>
    %1 = tpu.iota {dimensions = array<i32: 1>} : vector<64x32xi32>
    %2 = vector.broadcast %0 : vector<64x1xi32> to vector<64x32xi32>
    %3 = arith.cmpi eq, %2, %1 : vector<64x32xi32>
    %cst = arith.constant 1.000000e+00 : f32
    %cst_1 = arith.constant 0.000000e+00 : f32
    %4 = vector.broadcast %cst : f32 to vector<64x32xf32>
    %5 = vector.broadcast %cst_1 : f32 to vector<64x32xf32>
    %6 = arith.select %3, %4, %5 : vector<64x32xi1>, vector<64x32xf32>
    %c0_2 = arith.constant 0 : index
    %c0_3 = arith.constant 0 : index
    %7 = vector.load %arg3[%c0_2, %c0_3] : memref<32x128xf32, #tpu.memory_space<vmem>>, vector<32x128xf32>
    %cst_4 = arith.constant dense<0.000000e+00> : vector<64x128xf32>
    %8 = tpu.matmul %6, %7, %cst_4 {dimension_numbers = #tpu.dot_dimension_numbers<[1], [0], [0], [1], [0, 0, 1, 1], [], []>} : vector<64x32xf32>, vector<32x128xf32>, vector<64x128xf32> -> vector<64x128xf32>
    %c0_5 = arith.constant 0 : index
    %c0_6 = arith.constant 0 : index
    %9 = vector.load %arg4[%c0_5, %c0_6] : memref<32x128xf32, #tpu.memory_space<vmem>>, vector<32x128xf32>
    %cst_7 = arith.constant dense<0.000000e+00> : vector<64x128xf32>
    %10 = tpu.matmul %6, %9, %cst_7 {dimension_numbers = #tpu.dot_dimension_numbers<[1], [0], [0], [1], [0, 0, 1, 1], [], []>} : vector<64x32xf32>, vector<32x128xf32>, vector<64x128xf32> -> vector<64x128xf32>
    %11 = arith.addf %8, %10 : vector<64x128xf32>
    %c0_8 = arith.constant 0 : index
    %c0_9 = arith.constant 0 : index
    %12 = vector.load %arg2[%c0_8, %c0_9] : memref<8x8xf32, #tpu.memory_space<vmem>>, vector<8x8xf32>
    %c0_10 = arith.constant 0 : index
    %c0_11 = arith.constant 0 : index
    %13 = vector.load %arg5[%c0_10, %c0_11] : memref<8x128xf32, #tpu.memory_space<vmem>>, vector<8x128xf32>
    %cst_12 = arith.constant dense<0.000000e+00> : vector<8x128xf32>
    %14 = tpu.matmul %12, %13, %cst_12 {dimension_numbers = #tpu.dot_dimension_numbers<[1], [0], [0], [1], [0, 0, 1, 1], [], []>} : vector<8x8xf32>, vector<8x128xf32>, vector<8x128xf32> -> vector<8x128xf32>
    %c0_13 = arith.constant 0 : index
    %c0_14 = arith.constant 0 : index
    %15 = vector.load %arg7[%c0_13, %c0_14] : memref<1x128xf32, #tpu.memory_space<vmem>>, vector<1x128xf32>
    %16 = vector.broadcast %15 : vector<1x128xf32> to vector<8x128xf32>
    %17 = arith.addf %14, %16 : vector<8x128xf32>
    %c0_15 = arith.constant 0 : index
    %c0_16 = arith.constant 0 : index
    %18 = vector.load %arg6[%c0_15, %c0_16] : memref<32x128xf32, #tpu.memory_space<vmem>>, vector<32x128xf32>
    %c0_17 = arith.constant 0 : index
    %c0_18 = arith.constant 0 : index
    %19 = vector.load %arg9[%c0_17, %c0_18] : memref<32x128xf32, #tpu.memory_space<vmem>>, vector<32x128xf32>
    %c0_19 = arith.constant 0 : index
    %c0_20 = arith.constant 0 : index
    %20 = vector.load %arg8[%c0_19, %c0_20] : memref<32x128xf32, #tpu.memory_space<vmem>>, vector<32x128xf32>
    %c0_21 = arith.constant 0 : index
    %c0_22 = arith.constant 0 : index
    %21 = vector.load %arg10[%c0_21, %c0_22] : memref<1x128xf32, #tpu.memory_space<vmem>>, vector<1x128xf32>
    %22 = vector.shape_cast %21 : vector<1x128xf32> to vector<1x128xf32>
    %23 = vector.broadcast %22 : vector<1x128xf32> to vector<8x128xf32>
    %cst_23 = arith.constant 0.000000e+00 : f32
    %24 = vector.broadcast %cst_23 : f32 to vector<8x32xf32>
    %25 = vector.extract_strided_slice %11 {offsets = [0, 0], sizes = [8, 128], strides = [1, 1]} : vector<64x128xf32> to vector<8x128xf32>
    %26 = arith.addf %25, %17 : vector<8x128xf32>
    %cst_24 = arith.constant dense<0.000000e+00> : vector<8x128xf32>
    %27 = tpu.matmul %24, %18, %cst_24 {dimension_numbers = #tpu.dot_dimension_numbers<[1], [0], [0], [1], [0, 0, 1, 1], [], []>} : vector<8x32xf32>, vector<32x128xf32>, vector<8x128xf32> -> vector<8x128xf32>
    %28 = arith.addf %26, %27 : vector<8x128xf32>
    %29 = vector.extract_strided_slice %28 {offsets = [0, 0], sizes = [8, 32], strides = [1, 1]} : vector<8x128xf32> to vector<8x32xf32>
    %cst_25 = arith.constant 0.000000e+00 : f32
    %30 = vector.broadcast %cst_25 : f32 to vector<8x32xf32>
    %31 = arith.subf %30, %29 : vector<8x32xf32>
    %32 = math.exp %31 : vector<8x32xf32>
    %cst_26 = arith.constant 1.000000e+00 : f32
    %33 = vector.broadcast %cst_26 : f32 to vector<8x32xf32>
    %34 = arith.addf %33, %32 : vector<8x32xf32>
    %cst_27 = arith.constant 1.000000e+00 : f32
    %35 = vector.broadcast %cst_27 : f32 to vector<8x32xf32>
    %36 = arith.divf %35, %34 : vector<8x32xf32>
    %37 = vector.extract_strided_slice %28 {offsets = [0, 32], sizes = [8, 32], strides = [1, 1]} : vector<8x128xf32> to vector<8x32xf32>
    %cst_28 = arith.constant 0.000000e+00 : f32
    %38 = vector.broadcast %cst_28 : f32 to vector<8x32xf32>
    %39 = arith.subf %38, %37 : vector<8x32xf32>
    %40 = math.exp %39 : vector<8x32xf32>
    %cst_29 = arith.constant 1.000000e+00 : f32
    %41 = vector.broadcast %cst_29 : f32 to vector<8x32xf32>
    %42 = arith.addf %41, %40 : vector<8x32xf32>
    %cst_30 = arith.constant 1.000000e+00 : f32
    %43 = vector.broadcast %cst_30 : f32 to vector<8x32xf32>
    %44 = arith.divf %43, %42 : vector<8x32xf32>
    %45 = vector.extract_strided_slice %28 {offsets = [0, 64], sizes = [8, 32], strides = [1, 1]} : vector<8x128xf32> to vector<8x32xf32>
    %46 = math.tanh %45 : vector<8x32xf32>
    %47 = vector.extract_strided_slice %28 {offsets = [0, 96], sizes = [8, 32], strides = [1, 1]} : vector<8x128xf32> to vector<8x32xf32>
    %cst_31 = arith.constant 0.000000e+00 : f32
    %48 = vector.broadcast %cst_31 : f32 to vector<8x32xf32>
    %49 = arith.subf %48, %47 : vector<8x32xf32>
    %50 = math.exp %49 : vector<8x32xf32>
    %cst_32 = arith.constant 1.000000e+00 : f32
    %51 = vector.broadcast %cst_32 : f32 to vector<8x32xf32>
    %52 = arith.addf %51, %50 : vector<8x32xf32>
    %cst_33 = arith.constant 1.000000e+00 : f32
    %53 = vector.broadcast %cst_33 : f32 to vector<8x32xf32>
    %54 = arith.divf %53, %52 : vector<8x32xf32>
    %55 = arith.mulf %44, %24 : vector<8x32xf32>
    %56 = arith.mulf %36, %46 : vector<8x32xf32>
    %57 = arith.addf %55, %56 : vector<8x32xf32>
    %58 = math.tanh %57 : vector<8x32xf32>
    %59 = arith.mulf %54, %58 : vector<8x32xf32>
    %60 = vector.extract_strided_slice %11 {offsets = [8, 0], sizes = [8, 128], strides = [1, 1]} : vector<64x128xf32> to vector<8x128xf32>
    %61 = arith.addf %60, %17 : vector<8x128xf32>
    %cst_34 = arith.constant dense<0.000000e+00> : vector<8x128xf32>
    %62 = tpu.matmul %59, %18, %cst_34 {dimension_numbers = #tpu.dot_dimension_numbers<[1], [0], [0], [1], [0, 0, 1, 1], [], []>} : vector<8x32xf32>, vector<32x128xf32>, vector<8x128xf32> -> vector<8x128xf32>
    %63 = arith.addf %61, %62 : vector<8x128xf32>
    %64 = vector.extract_strided_slice %63 {offsets = [0, 0], sizes = [8, 32], strides = [1, 1]} : vector<8x128xf32> to vector<8x32xf32>
    %cst_35 = arith.constant 0.000000e+00 : f32
    %65 = vector.broadcast %cst_35 : f32 to vector<8x32xf32>
    %66 = arith.subf %65, %64 : vector<8x32xf32>
    %67 = math.exp %66 : vector<8x32xf32>
    %cst_36 = arith.constant 1.000000e+00 : f32
    %68 = vector.broadcast %cst_36 : f32 to vector<8x32xf32>
    %69 = arith.addf %68, %67 : vector<8x32xf32>
    %cst_37 = arith.constant 1.000000e+00 : f32
    %70 = vector.broadcast %cst_37 : f32 to vector<8x32xf32>
    %71 = arith.divf %70, %69 : vector<8x32xf32>
    %72 = vector.extract_strided_slice %63 {offsets = [0, 32], sizes = [8, 32], strides = [1, 1]} : vector<8x128xf32> to vector<8x32xf32>
    %cst_38 = arith.constant 0.000000e+00 : f32
    %73 = vector.broadcast %cst_38 : f32 to vector<8x32xf32>
    %74 = arith.subf %73, %72 : vector<8x32xf32>
    %75 = math.exp %74 : vector<8x32xf32>
    %cst_39 = arith.constant 1.000000e+00 : f32
    %76 = vector.broadcast %cst_39 : f32 to vector<8x32xf32>
    %77 = arith.addf %76, %75 : vector<8x32xf32>
    %cst_40 = arith.constant 1.000000e+00 : f32
    %78 = vector.broadcast %cst_40 : f32 to vector<8x32xf32>
    %79 = arith.divf %78, %77 : vector<8x32xf32>
    %80 = vector.extract_strided_slice %63 {offsets = [0, 64], sizes = [8, 32], strides = [1, 1]} : vector<8x128xf32> to vector<8x32xf32>
    %81 = math.tanh %80 : vector<8x32xf32>
    %82 = vector.extract_strided_slice %63 {offsets = [0, 96], sizes = [8, 32], strides = [1, 1]} : vector<8x128xf32> to vector<8x32xf32>
    %cst_41 = arith.constant 0.000000e+00 : f32
    %83 = vector.broadcast %cst_41 : f32 to vector<8x32xf32>
    %84 = arith.subf %83, %82 : vector<8x32xf32>
    %85 = math.exp %84 : vector<8x32xf32>
    %cst_42 = arith.constant 1.000000e+00 : f32
    %86 = vector.broadcast %cst_42 : f32 to vector<8x32xf32>
    %87 = arith.addf %86, %85 : vector<8x32xf32>
    %cst_43 = arith.constant 1.000000e+00 : f32
    %88 = vector.broadcast %cst_43 : f32 to vector<8x32xf32>
    %89 = arith.divf %88, %87 : vector<8x32xf32>
    %90 = arith.mulf %79, %57 : vector<8x32xf32>
    %91 = arith.mulf %71, %81 : vector<8x32xf32>
    %92 = arith.addf %90, %91 : vector<8x32xf32>
    %93 = math.tanh %92 : vector<8x32xf32>
    %94 = arith.mulf %89, %93 : vector<8x32xf32>
    %cst_44 = arith.constant dense<0.000000e+00> : vector<8x128xf32>
    %95 = tpu.matmul %59, %20, %cst_44 {dimension_numbers = #tpu.dot_dimension_numbers<[1], [0], [0], [1], [0, 0, 1, 1], [], []>} : vector<8x32xf32>, vector<32x128xf32>, vector<8x128xf32> -> vector<8x128xf32>
    %96 = arith.addf %95, %23 : vector<8x128xf32>
    %cst_45 = arith.constant dense<0.000000e+00> : vector<8x128xf32>
    %97 = tpu.matmul %24, %19, %cst_45 {dimension_numbers = #tpu.dot_dimension_numbers<[1], [0], [0], [1], [0, 0, 1, 1], [], []>} : vector<8x32xf32>, vector<32x128xf32>, vector<8x128xf32> -> vector<8x128xf32>
    %98 = arith.addf %96, %97 : vector<8x128xf32>
    %99 = vector.extract_strided_slice %98 {offsets = [0, 0], sizes = [8, 32], strides = [1, 1]} : vector<8x128xf32> to vector<8x32xf32>
    %cst_46 = arith.constant 0.000000e+00 : f32
    %100 = vector.broadcast %cst_46 : f32 to vector<8x32xf32>
    %101 = arith.subf %100, %99 : vector<8x32xf32>
    %102 = math.exp %101 : vector<8x32xf32>
    %cst_47 = arith.constant 1.000000e+00 : f32
    %103 = vector.broadcast %cst_47 : f32 to vector<8x32xf32>
    %104 = arith.addf %103, %102 : vector<8x32xf32>
    %cst_48 = arith.constant 1.000000e+00 : f32
    %105 = vector.broadcast %cst_48 : f32 to vector<8x32xf32>
    %106 = arith.divf %105, %104 : vector<8x32xf32>
    %107 = vector.extract_strided_slice %98 {offsets = [0, 32], sizes = [8, 32], strides = [1, 1]} : vector<8x128xf32> to vector<8x32xf32>
    %cst_49 = arith.constant 0.000000e+00 : f32
    %108 = vector.broadcast %cst_49 : f32 to vector<8x32xf32>
    %109 = arith.subf %108, %107 : vector<8x32xf32>
    %110 = math.exp %109 : vector<8x32xf32>
    %cst_50 = arith.constant 1.000000e+00 : f32
    %111 = vector.broadcast %cst_50 : f32 to vector<8x32xf32>
    %112 = arith.addf %111, %110 : vector<8x32xf32>
    %cst_51 = arith.constant 1.000000e+00 : f32
    %113 = vector.broadcast %cst_51 : f32 to vector<8x32xf32>
    %114 = arith.divf %113, %112 : vector<8x32xf32>
    %115 = vector.extract_strided_slice %98 {offsets = [0, 64], sizes = [8, 32], strides = [1, 1]} : vector<8x128xf32> to vector<8x32xf32>
    %116 = math.tanh %115 : vector<8x32xf32>
    %117 = vector.extract_strided_slice %98 {offsets = [0, 96], sizes = [8, 32], strides = [1, 1]} : vector<8x128xf32> to vector<8x32xf32>
    %cst_52 = arith.constant 0.000000e+00 : f32
    %118 = vector.broadcast %cst_52 : f32 to vector<8x32xf32>
    %119 = arith.subf %118, %117 : vector<8x32xf32>
    %120 = math.exp %119 : vector<8x32xf32>
    %cst_53 = arith.constant 1.000000e+00 : f32
    %121 = vector.broadcast %cst_53 : f32 to vector<8x32xf32>
    %122 = arith.addf %121, %120 : vector<8x32xf32>
    %cst_54 = arith.constant 1.000000e+00 : f32
    %123 = vector.broadcast %cst_54 : f32 to vector<8x32xf32>
    %124 = arith.divf %123, %122 : vector<8x32xf32>
    %125 = arith.mulf %114, %24 : vector<8x32xf32>
    %126 = arith.mulf %106, %116 : vector<8x32xf32>
    %127 = arith.addf %125, %126 : vector<8x32xf32>
    %128 = math.tanh %127 : vector<8x32xf32>
    %129 = arith.mulf %124, %128 : vector<8x32xf32>
    %c0_55 = arith.constant 0 : index
    %c0_56 = arith.constant 0 : index
    %130 = vector.load %arg18[%c0_55, %c0_56] : memref<64x32xf32, #tpu.memory_space<vmem>>, vector<8x32xf32>
    tpu.vector_store %arg18[%c0_55, %c0_56], %129 {strides = array<i32>} : memref<64x32xf32, #tpu.memory_space<vmem>>, vector<8x32xf32>,
    %131 = vector.extract_strided_slice %11 {offsets = [16, 0], sizes = [8, 128], strides = [1, 1]} : vector<64x128xf32> to vector<8x128xf32>
    %132 = arith.addf %131, %17 : vector<8x128xf32>
    %cst_57 = arith.constant dense<0.000000e+00> : vector<8x128xf32>
    %133 = tpu.matmul %94, %18, %cst_57 {dimension_numbers = #tpu.dot_dimension_numbers<[1], [0], [0], [1], [0, 0, 1, 1], [], []>} : vector<8x32xf32>, vector<32x128xf32>, vector<8x128xf32> -> vector<8x128xf32>
    %134 = arith.addf %132, %133 : vector<8x128xf32>
    %135 = vector.extract_strided_slice %134 {offsets = [0, 0], sizes = [8, 32], strides = [1, 1]} : vector<8x128xf32> to vector<8x32xf32>
    %cst_58 = arith.constant 0.000000e+00 : f32
    %136 = vector.broadcast %cst_58 : f32 to vector<8x32xf32>
    %137 = arith.subf %136, %135 : vector<8x32xf32>
    %138 = math.exp %137 : vector<8x32xf32>
    %cst_59 = arith.constant 1.000000e+00 : f32
    %139 = vector.broadcast %cst_59 : f32 to vector<8x32xf32>
    %140 = arith.addf %139, %138 : vector<8x32xf32>
    %cst_60 = arith.constant 1.000000e+00 : f32
    %141 = vector.broadcast %cst_60 : f32 to vector<8x32xf32>
    %142 = arith.divf %141, %140 : vector<8x32xf32>
    %143 = vector.extract_strided_slice %134 {offsets = [0, 32], sizes = [8, 32], strides = [1, 1]} : vector<8x128xf32> to vector<8x32xf32>
    %cst_61 = arith.constant 0.000000e+00 : f32
    %144 = vector.broadcast %cst_61 : f32 to vector<8x32xf32>
    %145 = arith.subf %144, %143 : vector<8x32xf32>
    %146 = math.exp %145 : vector<8x32xf32>
    %cst_62 = arith.constant 1.000000e+00 : f32
    %147 = vector.broadcast %cst_62 : f32 to vector<8x32xf32>
    %148 = arith.addf %147, %146 : vector<8x32xf32>
    %cst_63 = arith.constant 1.000000e+00 : f32
    %149 = vector.broadcast %cst_63 : f32 to vector<8x32xf32>
    %150 = arith.divf %149, %148 : vector<8x32xf32>
    %151 = vector.extract_strided_slice %134 {offsets = [0, 64], sizes = [8, 32], strides = [1, 1]} : vector<8x128xf32> to vector<8x32xf32>
    %152 = math.tanh %151 : vector<8x32xf32>
    %153 = vector.extract_strided_slice %134 {offsets = [0, 96], sizes = [8, 32], strides = [1, 1]} : vector<8x128xf32> to vector<8x32xf32>
    %cst_64 = arith.constant 0.000000e+00 : f32
    %154 = vector.broadcast %cst_64 : f32 to vector<8x32xf32>
    %155 = arith.subf %154, %153 : vector<8x32xf32>
    %156 = math.exp %155 : vector<8x32xf32>
    %cst_65 = arith.constant 1.000000e+00 : f32
    %157 = vector.broadcast %cst_65 : f32 to vector<8x32xf32>
    %158 = arith.addf %157, %156 : vector<8x32xf32>
    %cst_66 = arith.constant 1.000000e+00 : f32
    %159 = vector.broadcast %cst_66 : f32 to vector<8x32xf32>
    %160 = arith.divf %159, %158 : vector<8x32xf32>
    %161 = arith.mulf %150, %92 : vector<8x32xf32>
    %162 = arith.mulf %142, %152 : vector<8x32xf32>
    %163 = arith.addf %161, %162 : vector<8x32xf32>
    %164 = math.tanh %163 : vector<8x32xf32>
    %165 = arith.mulf %160, %164 : vector<8x32xf32>
    %cst_67 = arith.constant dense<0.000000e+00> : vector<8x128xf32>
    %166 = tpu.matmul %94, %20, %cst_67 {dimension_numbers = #tpu.dot_dimension_numbers<[1], [0], [0], [1], [0, 0, 1, 1], [], []>} : vector<8x32xf32>, vector<32x128xf32>, vector<8x128xf32> -> vector<8x128xf32>
    %167 = arith.addf %166, %23 : vector<8x128xf32>
    %cst_68 = arith.constant dense<0.000000e+00> : vector<8x128xf32>
    %168 = tpu.matmul %129, %19, %cst_68 {dimension_numbers = #tpu.dot_dimension_numbers<[1], [0], [0], [1], [0, 0, 1, 1], [], []>} : vector<8x32xf32>, vector<32x128xf32>, vector<8x128xf32> -> vector<8x128xf32>
    %169 = arith.addf %167, %168 : vector<8x128xf32>
    %170 = vector.extract_strided_slice %169 {offsets = [0, 0], sizes = [8, 32], strides = [1, 1]} : vector<8x128xf32> to vector<8x32xf32>
    %cst_69 = arith.constant 0.000000e+00 : f32
    %171 = vector.broadcast %cst_69 : f32 to vector<8x32xf32>
    %172 = arith.subf %171, %170 : vector<8x32xf32>
    %173 = math.exp %172 : vector<8x32xf32>
    %cst_70 = arith.constant 1.000000e+00 : f32
    %174 = vector.broadcast %cst_70 : f32 to vector<8x32xf32>
    %175 = arith.addf %174, %173 : vector<8x32xf32>
    %cst_71 = arith.constant 1.000000e+00 : f32
    %176 = vector.broadcast %cst_71 : f32 to vector<8x32xf32>
    %177 = arith.divf %176, %175 : vector<8x32xf32>
    %178 = vector.extract_strided_slice %169 {offsets = [0, 32], sizes = [8, 32], strides = [1, 1]} : vector<8x128xf32> to vector<8x32xf32>
    %cst_72 = arith.constant 0.000000e+00 : f32
    %179 = vector.broadcast %cst_72 : f32 to vector<8x32xf32>
    %180 = arith.subf %179, %178 : vector<8x32xf32>
    %181 = math.exp %180 : vector<8x32xf32>
    %cst_73 = arith.constant 1.000000e+00 : f32
    %182 = vector.broadcast %cst_73 : f32 to vector<8x32xf32>
    %183 = arith.addf %182, %181 : vector<8x32xf32>
    %cst_74 = arith.constant 1.000000e+00 : f32
    %184 = vector.broadcast %cst_74 : f32 to vector<8x32xf32>
    %185 = arith.divf %184, %183 : vector<8x32xf32>
    %186 = vector.extract_strided_slice %169 {offsets = [0, 64], sizes = [8, 32], strides = [1, 1]} : vector<8x128xf32> to vector<8x32xf32>
    %187 = math.tanh %186 : vector<8x32xf32>
    %188 = vector.extract_strided_slice %169 {offsets = [0, 96], sizes = [8, 32], strides = [1, 1]} : vector<8x128xf32> to vector<8x32xf32>
    %cst_75 = arith.constant 0.000000e+00 : f32
    %189 = vector.broadcast %cst_75 : f32 to vector<8x32xf32>
    %190 = arith.subf %189, %188 : vector<8x32xf32>
    %191 = math.exp %190 : vector<8x32xf32>
    %cst_76 = arith.constant 1.000000e+00 : f32
    %192 = vector.broadcast %cst_76 : f32 to vector<8x32xf32>
    %193 = arith.addf %192, %191 : vector<8x32xf32>
    %cst_77 = arith.constant 1.000000e+00 : f32
    %194 = vector.broadcast %cst_77 : f32 to vector<8x32xf32>
    %195 = arith.divf %194, %193 : vector<8x32xf32>
    %196 = arith.mulf %185, %127 : vector<8x32xf32>
    %197 = arith.mulf %177, %187 : vector<8x32xf32>
    %198 = arith.addf %196, %197 : vector<8x32xf32>
    %199 = math.tanh %198 : vector<8x32xf32>
    %200 = arith.mulf %195, %199 : vector<8x32xf32>
    %c8 = arith.constant 8 : index
    %c0_78 = arith.constant 0 : index
    %201 = vector.load %arg18[%c8, %c0_78] : memref<64x32xf32, #tpu.memory_space<vmem>>, vector<8x32xf32>
    tpu.vector_store %arg18[%c8, %c0_78], %200 {strides = array<i32>} : memref<64x32xf32, #tpu.memory_space<vmem>>, vector<8x32xf32>,
    %202 = vector.extract_strided_slice %11 {offsets = [24, 0], sizes = [8, 128], strides = [1, 1]} : vector<64x128xf32> to vector<8x128xf32>
    %203 = arith.addf %202, %17 : vector<8x128xf32>
    %cst_79 = arith.constant dense<0.000000e+00> : vector<8x128xf32>
    %204 = tpu.matmul %165, %18, %cst_79 {dimension_numbers = #tpu.dot_dimension_numbers<[1], [0], [0], [1], [0, 0, 1, 1], [], []>} : vector<8x32xf32>, vector<32x128xf32>, vector<8x128xf32> -> vector<8x128xf32>
    %205 = arith.addf %203, %204 : vector<8x128xf32>
    %206 = vector.extract_strided_slice %205 {offsets = [0, 0], sizes = [8, 32], strides = [1, 1]} : vector<8x128xf32> to vector<8x32xf32>
    %cst_80 = arith.constant 0.000000e+00 : f32
    %207 = vector.broadcast %cst_80 : f32 to vector<8x32xf32>
    %208 = arith.subf %207, %206 : vector<8x32xf32>
    %209 = math.exp %208 : vector<8x32xf32>
    %cst_81 = arith.constant 1.000000e+00 : f32
    %210 = vector.broadcast %cst_81 : f32 to vector<8x32xf32>
    %211 = arith.addf %210, %209 : vector<8x32xf32>
    %cst_82 = arith.constant 1.000000e+00 : f32
    %212 = vector.broadcast %cst_82 : f32 to vector<8x32xf32>
    %213 = arith.divf %212, %211 : vector<8x32xf32>
    %214 = vector.extract_strided_slice %205 {offsets = [0, 32], sizes = [8, 32], strides = [1, 1]} : vector<8x128xf32> to vector<8x32xf32>
    %cst_83 = arith.constant 0.000000e+00 : f32
    %215 = vector.broadcast %cst_83 : f32 to vector<8x32xf32>
    %216 = arith.subf %215, %214 : vector<8x32xf32>
    %217 = math.exp %216 : vector<8x32xf32>
    %cst_84 = arith.constant 1.000000e+00 : f32
    %218 = vector.broadcast %cst_84 : f32 to vector<8x32xf32>
    %219 = arith.addf %218, %217 : vector<8x32xf32>
    %cst_85 = arith.constant 1.000000e+00 : f32
    %220 = vector.broadcast %cst_85 : f32 to vector<8x32xf32>
    %221 = arith.divf %220, %219 : vector<8x32xf32>
    %222 = vector.extract_strided_slice %205 {offsets = [0, 64], sizes = [8, 32], strides = [1, 1]} : vector<8x128xf32> to vector<8x32xf32>
    %223 = math.tanh %222 : vector<8x32xf32>
    %224 = vector.extract_strided_slice %205 {offsets = [0, 96], sizes = [8, 32], strides = [1, 1]} : vector<8x128xf32> to vector<8x32xf32>
    %cst_86 = arith.constant 0.000000e+00 : f32
    %225 = vector.broadcast %cst_86 : f32 to vector<8x32xf32>
    %226 = arith.subf %225, %224 : vector<8x32xf32>
    %227 = math.exp %226 : vector<8x32xf32>
    %cst_87 = arith.constant 1.000000e+00 : f32
    %228 = vector.broadcast %cst_87 : f32 to vector<8x32xf32>
    %229 = arith.addf %228, %227 : vector<8x32xf32>
    %cst_88 = arith.constant 1.000000e+00 : f32
    %230 = vector.broadcast %cst_88 : f32 to vector<8x32xf32>
    %231 = arith.divf %230, %229 : vector<8x32xf32>
    %232 = arith.mulf %221, %163 : vector<8x32xf32>
    %233 = arith.mulf %213, %223 : vector<8x32xf32>
    %234 = arith.addf %232, %233 : vector<8x32xf32>
    %235 = math.tanh %234 : vector<8x32xf32>
    %236 = arith.mulf %231, %235 : vector<8x32xf32>
    %cst_89 = arith.constant dense<0.000000e+00> : vector<8x128xf32>
    %237 = tpu.matmul %165, %20, %cst_89 {dimension_numbers = #tpu.dot_dimension_numbers<[1], [0], [0], [1], [0, 0, 1, 1], [], []>} : vector<8x32xf32>, vector<32x128xf32>, vector<8x128xf32> -> vector<8x128xf32>
    %238 = arith.addf %237, %23 : vector<8x128xf32>
    %cst_90 = arith.constant dense<0.000000e+00> : vector<8x128xf32>
    %239 = tpu.matmul %200, %19, %cst_90 {dimension_numbers = #tpu.dot_dimension_numbers<[1], [0], [0], [1], [0, 0, 1, 1], [], []>} : vector<8x32xf32>, vector<32x128xf32>, vector<8x128xf32> -> vector<8x128xf32>
    %240 = arith.addf %238, %239 : vector<8x128xf32>
    %241 = vector.extract_strided_slice %240 {offsets = [0, 0], sizes = [8, 32], strides = [1, 1]} : vector<8x128xf32> to vector<8x32xf32>
    %cst_91 = arith.constant 0.000000e+00 : f32
    %242 = vector.broadcast %cst_91 : f32 to vector<8x32xf32>
    %243 = arith.subf %242, %241 : vector<8x32xf32>
    %244 = math.exp %243 : vector<8x32xf32>
    %cst_92 = arith.constant 1.000000e+00 : f32
    %245 = vector.broadcast %cst_92 : f32 to vector<8x32xf32>
    %246 = arith.addf %245, %244 : vector<8x32xf32>
    %cst_93 = arith.constant 1.000000e+00 : f32
    %247 = vector.broadcast %cst_93 : f32 to vector<8x32xf32>
    %248 = arith.divf %247, %246 : vector<8x32xf32>
    %249 = vector.extract_strided_slice %240 {offsets = [0, 32], sizes = [8, 32], strides = [1, 1]} : vector<8x128xf32> to vector<8x32xf32>
    %cst_94 = arith.constant 0.000000e+00 : f32
    %250 = vector.broadcast %cst_94 : f32 to vector<8x32xf32>
    %251 = arith.subf %250, %249 : vector<8x32xf32>
    %252 = math.exp %251 : vector<8x32xf32>
    %cst_95 = arith.constant 1.000000e+00 : f32
    %253 = vector.broadcast %cst_95 : f32 to vector<8x32xf32>
    %254 = arith.addf %253, %252 : vector<8x32xf32>
    %cst_96 = arith.constant 1.000000e+00 : f32
    %255 = vector.broadcast %cst_96 : f32 to vector<8x32xf32>
    %256 = arith.divf %255, %254 : vector<8x32xf32>
    %257 = vector.extract_strided_slice %240 {offsets = [0, 64], sizes = [8, 32], strides = [1, 1]} : vector<8x128xf32> to vector<8x32xf32>
    %258 = math.tanh %257 : vector<8x32xf32>
    %259 = vector.extract_strided_slice %240 {offsets = [0, 96], sizes = [8, 32], strides = [1, 1]} : vector<8x128xf32> to vector<8x32xf32>
    %cst_97 = arith.constant 0.000000e+00 : f32
    %260 = vector.broadcast %cst_97 : f32 to vector<8x32xf32>
    %261 = arith.subf %260, %259 : vector<8x32xf32>
    %262 = math.exp %261 : vector<8x32xf32>
    %cst_98 = arith.constant 1.000000e+00 : f32
    %263 = vector.broadcast %cst_98 : f32 to vector<8x32xf32>
    %264 = arith.addf %263, %262 : vector<8x32xf32>
    %cst_99 = arith.constant 1.000000e+00 : f32
    %265 = vector.broadcast %cst_99 : f32 to vector<8x32xf32>
    %266 = arith.divf %265, %264 : vector<8x32xf32>
    %267 = arith.mulf %256, %198 : vector<8x32xf32>
    %268 = arith.mulf %248, %258 : vector<8x32xf32>
    %269 = arith.addf %267, %268 : vector<8x32xf32>
    %270 = math.tanh %269 : vector<8x32xf32>
    %271 = arith.mulf %266, %270 : vector<8x32xf32>
    %c16 = arith.constant 16 : index
    %c0_100 = arith.constant 0 : index
    %272 = vector.load %arg18[%c16, %c0_100] : memref<64x32xf32, #tpu.memory_space<vmem>>, vector<8x32xf32>
    tpu.vector_store %arg18[%c16, %c0_100], %271 {strides = array<i32>} : memref<64x32xf32, #tpu.memory_space<vmem>>, vector<8x32xf32>,
    %273 = vector.extract_strided_slice %11 {offsets = [32, 0], sizes = [8, 128], strides = [1, 1]} : vector<64x128xf32> to vector<8x128xf32>
    %274 = arith.addf %273, %17 : vector<8x128xf32>
    %cst_101 = arith.constant dense<0.000000e+00> : vector<8x128xf32>
    %275 = tpu.matmul %236, %18, %cst_101 {dimension_numbers = #tpu.dot_dimension_numbers<[1], [0], [0], [1], [0, 0, 1, 1], [], []>} : vector<8x32xf32>, vector<32x128xf32>, vector<8x128xf32> -> vector<8x128xf32>
    %276 = arith.addf %274, %275 : vector<8x128xf32>
    %277 = vector.extract_strided_slice %276 {offsets = [0, 0], sizes = [8, 32], strides = [1, 1]} : vector<8x128xf32> to vector<8x32xf32>
    %cst_102 = arith.constant 0.000000e+00 : f32
    %278 = vector.broadcast %cst_102 : f32 to vector<8x32xf32>
    %279 = arith.subf %278, %277 : vector<8x32xf32>
    %280 = math.exp %279 : vector<8x32xf32>
    %cst_103 = arith.constant 1.000000e+00 : f32
    %281 = vector.broadcast %cst_103 : f32 to vector<8x32xf32>
    %282 = arith.addf %281, %280 : vector<8x32xf32>
    %cst_104 = arith.constant 1.000000e+00 : f32
    %283 = vector.broadcast %cst_104 : f32 to vector<8x32xf32>
    %284 = arith.divf %283, %282 : vector<8x32xf32>
    %285 = vector.extract_strided_slice %276 {offsets = [0, 32], sizes = [8, 32], strides = [1, 1]} : vector<8x128xf32> to vector<8x32xf32>
    %cst_105 = arith.constant 0.000000e+00 : f32
    %286 = vector.broadcast %cst_105 : f32 to vector<8x32xf32>
    %287 = arith.subf %286, %285 : vector<8x32xf32>
    %288 = math.exp %287 : vector<8x32xf32>
    %cst_106 = arith.constant 1.000000e+00 : f32
    %289 = vector.broadcast %cst_106 : f32 to vector<8x32xf32>
    %290 = arith.addf %289, %288 : vector<8x32xf32>
    %cst_107 = arith.constant 1.000000e+00 : f32
    %291 = vector.broadcast %cst_107 : f32 to vector<8x32xf32>
    %292 = arith.divf %291, %290 : vector<8x32xf32>
    %293 = vector.extract_strided_slice %276 {offsets = [0, 64], sizes = [8, 32], strides = [1, 1]} : vector<8x128xf32> to vector<8x32xf32>
    %294 = math.tanh %293 : vector<8x32xf32>
    %295 = vector.extract_strided_slice %276 {offsets = [0, 96], sizes = [8, 32], strides = [1, 1]} : vector<8x128xf32> to vector<8x32xf32>
    %cst_108 = arith.constant 0.000000e+00 : f32
    %296 = vector.broadcast %cst_108 : f32 to vector<8x32xf32>
    %297 = arith.subf %296, %295 : vector<8x32xf32>
    %298 = math.exp %297 : vector<8x32xf32>
    %cst_109 = arith.constant 1.000000e+00 : f32
    %299 = vector.broadcast %cst_109 : f32 to vector<8x32xf32>
    %300 = arith.addf %299, %298 : vector<8x32xf32>
    %cst_110 = arith.constant 1.000000e+00 : f32
    %301 = vector.broadcast %cst_110 : f32 to vector<8x32xf32>
    %302 = arith.divf %301, %300 : vector<8x32xf32>
    %303 = arith.mulf %292, %234 : vector<8x32xf32>
    %304 = arith.mulf %284, %294 : vector<8x32xf32>
    %305 = arith.addf %303, %304 : vector<8x32xf32>
    %306 = math.tanh %305 : vector<8x32xf32>
    %307 = arith.mulf %302, %306 : vector<8x32xf32>
    %cst_111 = arith.constant dense<0.000000e+00> : vector<8x128xf32>
    %308 = tpu.matmul %236, %20, %cst_111 {dimension_numbers = #tpu.dot_dimension_numbers<[1], [0], [0], [1], [0, 0, 1, 1], [], []>} : vector<8x32xf32>, vector<32x128xf32>, vector<8x128xf32> -> vector<8x128xf32>
    %309 = arith.addf %308, %23 : vector<8x128xf32>
    %cst_112 = arith.constant dense<0.000000e+00> : vector<8x128xf32>
    %310 = tpu.matmul %271, %19, %cst_112 {dimension_numbers = #tpu.dot_dimension_numbers<[1], [0], [0], [1], [0, 0, 1, 1], [], []>} : vector<8x32xf32>, vector<32x128xf32>, vector<8x128xf32> -> vector<8x128xf32>
    %311 = arith.addf %309, %310 : vector<8x128xf32>
    %312 = vector.extract_strided_slice %311 {offsets = [0, 0], sizes = [8, 32], strides = [1, 1]} : vector<8x128xf32> to vector<8x32xf32>
    %cst_113 = arith.constant 0.000000e+00 : f32
    %313 = vector.broadcast %cst_113 : f32 to vector<8x32xf32>
    %314 = arith.subf %313, %312 : vector<8x32xf32>
    %315 = math.exp %314 : vector<8x32xf32>
    %cst_114 = arith.constant 1.000000e+00 : f32
    %316 = vector.broadcast %cst_114 : f32 to vector<8x32xf32>
    %317 = arith.addf %316, %315 : vector<8x32xf32>
    %cst_115 = arith.constant 1.000000e+00 : f32
    %318 = vector.broadcast %cst_115 : f32 to vector<8x32xf32>
    %319 = arith.divf %318, %317 : vector<8x32xf32>
    %320 = vector.extract_strided_slice %311 {offsets = [0, 32], sizes = [8, 32], strides = [1, 1]} : vector<8x128xf32> to vector<8x32xf32>
    %cst_116 = arith.constant 0.000000e+00 : f32
    %321 = vector.broadcast %cst_116 : f32 to vector<8x32xf32>
    %322 = arith.subf %321, %320 : vector<8x32xf32>
    %323 = math.exp %322 : vector<8x32xf32>
    %cst_117 = arith.constant 1.000000e+00 : f32
    %324 = vector.broadcast %cst_117 : f32 to vector<8x32xf32>
    %325 = arith.addf %324, %323 : vector<8x32xf32>
    %cst_118 = arith.constant 1.000000e+00 : f32
    %326 = vector.broadcast %cst_118 : f32 to vector<8x32xf32>
    %327 = arith.divf %326, %325 : vector<8x32xf32>
    %328 = vector.extract_strided_slice %311 {offsets = [0, 64], sizes = [8, 32], strides = [1, 1]} : vector<8x128xf32> to vector<8x32xf32>
    %329 = math.tanh %328 : vector<8x32xf32>
    %330 = vector.extract_strided_slice %311 {offsets = [0, 96], sizes = [8, 32], strides = [1, 1]} : vector<8x128xf32> to vector<8x32xf32>
    %cst_119 = arith.constant 0.000000e+00 : f32
    %331 = vector.broadcast %cst_119 : f32 to vector<8x32xf32>
    %332 = arith.subf %331, %330 : vector<8x32xf32>
    %333 = math.exp %332 : vector<8x32xf32>
    %cst_120 = arith.constant 1.000000e+00 : f32
    %334 = vector.broadcast %cst_120 : f32 to vector<8x32xf32>
    %335 = arith.addf %334, %333 : vector<8x32xf32>
    %cst_121 = arith.constant 1.000000e+00 : f32
    %336 = vector.broadcast %cst_121 : f32 to vector<8x32xf32>
    %337 = arith.divf %336, %335 : vector<8x32xf32>
    %338 = arith.mulf %327, %269 : vector<8x32xf32>
    %339 = arith.mulf %319, %329 : vector<8x32xf32>
    %340 = arith.addf %338, %339 : vector<8x32xf32>
    %341 = math.tanh %340 : vector<8x32xf32>
    %342 = arith.mulf %337, %341 : vector<8x32xf32>
    %c24 = arith.constant 24 : index
    %c0_122 = arith.constant 0 : index
    %343 = vector.load %arg18[%c24, %c0_122] : memref<64x32xf32, #tpu.memory_space<vmem>>, vector<8x32xf32>
    tpu.vector_store %arg18[%c24, %c0_122], %342 {strides = array<i32>} : memref<64x32xf32, #tpu.memory_space<vmem>>, vector<8x32xf32>,
    %344 = vector.extract_strided_slice %11 {offsets = [40, 0], sizes = [8, 128], strides = [1, 1]} : vector<64x128xf32> to vector<8x128xf32>
    %345 = arith.addf %344, %17 : vector<8x128xf32>
    %cst_123 = arith.constant dense<0.000000e+00> : vector<8x128xf32>
    %346 = tpu.matmul %307, %18, %cst_123 {dimension_numbers = #tpu.dot_dimension_numbers<[1], [0], [0], [1], [0, 0, 1, 1], [], []>} : vector<8x32xf32>, vector<32x128xf32>, vector<8x128xf32> -> vector<8x128xf32>
    %347 = arith.addf %345, %346 : vector<8x128xf32>
    %348 = vector.extract_strided_slice %347 {offsets = [0, 0], sizes = [8, 32], strides = [1, 1]} : vector<8x128xf32> to vector<8x32xf32>
    %cst_124 = arith.constant 0.000000e+00 : f32
    %349 = vector.broadcast %cst_124 : f32 to vector<8x32xf32>
    %350 = arith.subf %349, %348 : vector<8x32xf32>
    %351 = math.exp %350 : vector<8x32xf32>
    %cst_125 = arith.constant 1.000000e+00 : f32
    %352 = vector.broadcast %cst_125 : f32 to vector<8x32xf32>
    %353 = arith.addf %352, %351 : vector<8x32xf32>
    %cst_126 = arith.constant 1.000000e+00 : f32
    %354 = vector.broadcast %cst_126 : f32 to vector<8x32xf32>
    %355 = arith.divf %354, %353 : vector<8x32xf32>
    %356 = vector.extract_strided_slice %347 {offsets = [0, 32], sizes = [8, 32], strides = [1, 1]} : vector<8x128xf32> to vector<8x32xf32>
    %cst_127 = arith.constant 0.000000e+00 : f32
    %357 = vector.broadcast %cst_127 : f32 to vector<8x32xf32>
    %358 = arith.subf %357, %356 : vector<8x32xf32>
    %359 = math.exp %358 : vector<8x32xf32>
    %cst_128 = arith.constant 1.000000e+00 : f32
    %360 = vector.broadcast %cst_128 : f32 to vector<8x32xf32>
    %361 = arith.addf %360, %359 : vector<8x32xf32>
    %cst_129 = arith.constant 1.000000e+00 : f32
    %362 = vector.broadcast %cst_129 : f32 to vector<8x32xf32>
    %363 = arith.divf %362, %361 : vector<8x32xf32>
    %364 = vector.extract_strided_slice %347 {offsets = [0, 64], sizes = [8, 32], strides = [1, 1]} : vector<8x128xf32> to vector<8x32xf32>
    %365 = math.tanh %364 : vector<8x32xf32>
    %366 = vector.extract_strided_slice %347 {offsets = [0, 96], sizes = [8, 32], strides = [1, 1]} : vector<8x128xf32> to vector<8x32xf32>
    %cst_130 = arith.constant 0.000000e+00 : f32
    %367 = vector.broadcast %cst_130 : f32 to vector<8x32xf32>
    %368 = arith.subf %367, %366 : vector<8x32xf32>
    %369 = math.exp %368 : vector<8x32xf32>
    %cst_131 = arith.constant 1.000000e+00 : f32
    %370 = vector.broadcast %cst_131 : f32 to vector<8x32xf32>
    %371 = arith.addf %370, %369 : vector<8x32xf32>
    %cst_132 = arith.constant 1.000000e+00 : f32
    %372 = vector.broadcast %cst_132 : f32 to vector<8x32xf32>
    %373 = arith.divf %372, %371 : vector<8x32xf32>
    %374 = arith.mulf %363, %305 : vector<8x32xf32>
    %375 = arith.mulf %355, %365 : vector<8x32xf32>
    %376 = arith.addf %374, %375 : vector<8x32xf32>
    %377 = math.tanh %376 : vector<8x32xf32>
    %378 = arith.mulf %373, %377 : vector<8x32xf32>
    %cst_133 = arith.constant dense<0.000000e+00> : vector<8x128xf32>
    %379 = tpu.matmul %307, %20, %cst_133 {dimension_numbers = #tpu.dot_dimension_numbers<[1], [0], [0], [1], [0, 0, 1, 1], [], []>} : vector<8x32xf32>, vector<32x128xf32>, vector<8x128xf32> -> vector<8x128xf32>
    %380 = arith.addf %379, %23 : vector<8x128xf32>
    %cst_134 = arith.constant dense<0.000000e+00> : vector<8x128xf32>
    %381 = tpu.matmul %342, %19, %cst_134 {dimension_numbers = #tpu.dot_dimension_numbers<[1], [0], [0], [1], [0, 0, 1, 1], [], []>} : vector<8x32xf32>, vector<32x128xf32>, vector<8x128xf32> -> vector<8x128xf32>
    %382 = arith.addf %380, %381 : vector<8x128xf32>
    %383 = vector.extract_strided_slice %382 {offsets = [0, 0], sizes = [8, 32], strides = [1, 1]} : vector<8x128xf32> to vector<8x32xf32>
    %cst_135 = arith.constant 0.000000e+00 : f32
    %384 = vector.broadcast %cst_135 : f32 to vector<8x32xf32>
    %385 = arith.subf %384, %383 : vector<8x32xf32>
    %386 = math.exp %385 : vector<8x32xf32>
    %cst_136 = arith.constant 1.000000e+00 : f32
    %387 = vector.broadcast %cst_136 : f32 to vector<8x32xf32>
    %388 = arith.addf %387, %386 : vector<8x32xf32>
    %cst_137 = arith.constant 1.000000e+00 : f32
    %389 = vector.broadcast %cst_137 : f32 to vector<8x32xf32>
    %390 = arith.divf %389, %388 : vector<8x32xf32>
    %391 = vector.extract_strided_slice %382 {offsets = [0, 32], sizes = [8, 32], strides = [1, 1]} : vector<8x128xf32> to vector<8x32xf32>
    %cst_138 = arith.constant 0.000000e+00 : f32
    %392 = vector.broadcast %cst_138 : f32 to vector<8x32xf32>
    %393 = arith.subf %392, %391 : vector<8x32xf32>
    %394 = math.exp %393 : vector<8x32xf32>
    %cst_139 = arith.constant 1.000000e+00 : f32
    %395 = vector.broadcast %cst_139 : f32 to vector<8x32xf32>
    %396 = arith.addf %395, %394 : vector<8x32xf32>
    %cst_140 = arith.constant 1.000000e+00 : f32
    %397 = vector.broadcast %cst_140 : f32 to vector<8x32xf32>
    %398 = arith.divf %397, %396 : vector<8x32xf32>
    %399 = vector.extract_strided_slice %382 {offsets = [0, 64], sizes = [8, 32], strides = [1, 1]} : vector<8x128xf32> to vector<8x32xf32>
    %400 = math.tanh %399 : vector<8x32xf32>
    %401 = vector.extract_strided_slice %382 {offsets = [0, 96], sizes = [8, 32], strides = [1, 1]} : vector<8x128xf32> to vector<8x32xf32>
    %cst_141 = arith.constant 0.000000e+00 : f32
    %402 = vector.broadcast %cst_141 : f32 to vector<8x32xf32>
    %403 = arith.subf %402, %401 : vector<8x32xf32>
    %404 = math.exp %403 : vector<8x32xf32>
    %cst_142 = arith.constant 1.000000e+00 : f32
    %405 = vector.broadcast %cst_142 : f32 to vector<8x32xf32>
    %406 = arith.addf %405, %404 : vector<8x32xf32>
    %cst_143 = arith.constant 1.000000e+00 : f32
    %407 = vector.broadcast %cst_143 : f32 to vector<8x32xf32>
    %408 = arith.divf %407, %406 : vector<8x32xf32>
    %409 = arith.mulf %398, %340 : vector<8x32xf32>
    %410 = arith.mulf %390, %400 : vector<8x32xf32>
    %411 = arith.addf %409, %410 : vector<8x32xf32>
    %412 = math.tanh %411 : vector<8x32xf32>
    %413 = arith.mulf %408, %412 : vector<8x32xf32>
    %c32 = arith.constant 32 : index
    %c0_144 = arith.constant 0 : index
    %414 = vector.load %arg18[%c32, %c0_144] : memref<64x32xf32, #tpu.memory_space<vmem>>, vector<8x32xf32>
    tpu.vector_store %arg18[%c32, %c0_144], %413 {strides = array<i32>} : memref<64x32xf32, #tpu.memory_space<vmem>>, vector<8x32xf32>,
    %415 = vector.extract_strided_slice %11 {offsets = [48, 0], sizes = [8, 128], strides = [1, 1]} : vector<64x128xf32> to vector<8x128xf32>
    %416 = arith.addf %415, %17 : vector<8x128xf32>
    %cst_145 = arith.constant dense<0.000000e+00> : vector<8x128xf32>
    %417 = tpu.matmul %378, %18, %cst_145 {dimension_numbers = #tpu.dot_dimension_numbers<[1], [0], [0], [1], [0, 0, 1, 1], [], []>} : vector<8x32xf32>, vector<32x128xf32>, vector<8x128xf32> -> vector<8x128xf32>
    %418 = arith.addf %416, %417 : vector<8x128xf32>
    %419 = vector.extract_strided_slice %418 {offsets = [0, 0], sizes = [8, 32], strides = [1, 1]} : vector<8x128xf32> to vector<8x32xf32>
    %cst_146 = arith.constant 0.000000e+00 : f32
    %420 = vector.broadcast %cst_146 : f32 to vector<8x32xf32>
    %421 = arith.subf %420, %419 : vector<8x32xf32>
    %422 = math.exp %421 : vector<8x32xf32>
    %cst_147 = arith.constant 1.000000e+00 : f32
    %423 = vector.broadcast %cst_147 : f32 to vector<8x32xf32>
    %424 = arith.addf %423, %422 : vector<8x32xf32>
    %cst_148 = arith.constant 1.000000e+00 : f32
    %425 = vector.broadcast %cst_148 : f32 to vector<8x32xf32>
    %426 = arith.divf %425, %424 : vector<8x32xf32>
    %427 = vector.extract_strided_slice %418 {offsets = [0, 32], sizes = [8, 32], strides = [1, 1]} : vector<8x128xf32> to vector<8x32xf32>
    %cst_149 = arith.constant 0.000000e+00 : f32
    %428 = vector.broadcast %cst_149 : f32 to vector<8x32xf32>
    %429 = arith.subf %428, %427 : vector<8x32xf32>
    %430 = math.exp %429 : vector<8x32xf32>
    %cst_150 = arith.constant 1.000000e+00 : f32
    %431 = vector.broadcast %cst_150 : f32 to vector<8x32xf32>
    %432 = arith.addf %431, %430 : vector<8x32xf32>
    %cst_151 = arith.constant 1.000000e+00 : f32
    %433 = vector.broadcast %cst_151 : f32 to vector<8x32xf32>
    %434 = arith.divf %433, %432 : vector<8x32xf32>
    %435 = vector.extract_strided_slice %418 {offsets = [0, 64], sizes = [8, 32], strides = [1, 1]} : vector<8x128xf32> to vector<8x32xf32>
    %436 = math.tanh %435 : vector<8x32xf32>
    %437 = vector.extract_strided_slice %418 {offsets = [0, 96], sizes = [8, 32], strides = [1, 1]} : vector<8x128xf32> to vector<8x32xf32>
    %cst_152 = arith.constant 0.000000e+00 : f32
    %438 = vector.broadcast %cst_152 : f32 to vector<8x32xf32>
    %439 = arith.subf %438, %437 : vector<8x32xf32>
    %440 = math.exp %439 : vector<8x32xf32>
    %cst_153 = arith.constant 1.000000e+00 : f32
    %441 = vector.broadcast %cst_153 : f32 to vector<8x32xf32>
    %442 = arith.addf %441, %440 : vector<8x32xf32>
    %cst_154 = arith.constant 1.000000e+00 : f32
    %443 = vector.broadcast %cst_154 : f32 to vector<8x32xf32>
    %444 = arith.divf %443, %442 : vector<8x32xf32>
    %445 = arith.mulf %434, %376 : vector<8x32xf32>
    %446 = arith.mulf %426, %436 : vector<8x32xf32>
    %447 = arith.addf %445, %446 : vector<8x32xf32>
    %448 = math.tanh %447 : vector<8x32xf32>
    %449 = arith.mulf %444, %448 : vector<8x32xf32>
    %cst_155 = arith.constant dense<0.000000e+00> : vector<8x128xf32>
    %450 = tpu.matmul %378, %20, %cst_155 {dimension_numbers = #tpu.dot_dimension_numbers<[1], [0], [0], [1], [0, 0, 1, 1], [], []>} : vector<8x32xf32>, vector<32x128xf32>, vector<8x128xf32> -> vector<8x128xf32>
    %451 = arith.addf %450, %23 : vector<8x128xf32>
    %cst_156 = arith.constant dense<0.000000e+00> : vector<8x128xf32>
    %452 = tpu.matmul %413, %19, %cst_156 {dimension_numbers = #tpu.dot_dimension_numbers<[1], [0], [0], [1], [0, 0, 1, 1], [], []>} : vector<8x32xf32>, vector<32x128xf32>, vector<8x128xf32> -> vector<8x128xf32>
    %453 = arith.addf %451, %452 : vector<8x128xf32>
    %454 = vector.extract_strided_slice %453 {offsets = [0, 0], sizes = [8, 32], strides = [1, 1]} : vector<8x128xf32> to vector<8x32xf32>
    %cst_157 = arith.constant 0.000000e+00 : f32
    %455 = vector.broadcast %cst_157 : f32 to vector<8x32xf32>
    %456 = arith.subf %455, %454 : vector<8x32xf32>
    %457 = math.exp %456 : vector<8x32xf32>
    %cst_158 = arith.constant 1.000000e+00 : f32
    %458 = vector.broadcast %cst_158 : f32 to vector<8x32xf32>
    %459 = arith.addf %458, %457 : vector<8x32xf32>
    %cst_159 = arith.constant 1.000000e+00 : f32
    %460 = vector.broadcast %cst_159 : f32 to vector<8x32xf32>
    %461 = arith.divf %460, %459 : vector<8x32xf32>
    %462 = vector.extract_strided_slice %453 {offsets = [0, 32], sizes = [8, 32], strides = [1, 1]} : vector<8x128xf32> to vector<8x32xf32>
    %cst_160 = arith.constant 0.000000e+00 : f32
    %463 = vector.broadcast %cst_160 : f32 to vector<8x32xf32>
    %464 = arith.subf %463, %462 : vector<8x32xf32>
    %465 = math.exp %464 : vector<8x32xf32>
    %cst_161 = arith.constant 1.000000e+00 : f32
    %466 = vector.broadcast %cst_161 : f32 to vector<8x32xf32>
    %467 = arith.addf %466, %465 : vector<8x32xf32>
    %cst_162 = arith.constant 1.000000e+00 : f32
    %468 = vector.broadcast %cst_162 : f32 to vector<8x32xf32>
    %469 = arith.divf %468, %467 : vector<8x32xf32>
    %470 = vector.extract_strided_slice %453 {offsets = [0, 64], sizes = [8, 32], strides = [1, 1]} : vector<8x128xf32> to vector<8x32xf32>
    %471 = math.tanh %470 : vector<8x32xf32>
    %472 = vector.extract_strided_slice %453 {offsets = [0, 96], sizes = [8, 32], strides = [1, 1]} : vector<8x128xf32> to vector<8x32xf32>
    %cst_163 = arith.constant 0.000000e+00 : f32
    %473 = vector.broadcast %cst_163 : f32 to vector<8x32xf32>
    %474 = arith.subf %473, %472 : vector<8x32xf32>
    %475 = math.exp %474 : vector<8x32xf32>
    %cst_164 = arith.constant 1.000000e+00 : f32
    %476 = vector.broadcast %cst_164 : f32 to vector<8x32xf32>
    %477 = arith.addf %476, %475 : vector<8x32xf32>
    %cst_165 = arith.constant 1.000000e+00 : f32
    %478 = vector.broadcast %cst_165 : f32 to vector<8x32xf32>
    %479 = arith.divf %478, %477 : vector<8x32xf32>
    %480 = arith.mulf %469, %411 : vector<8x32xf32>
    %481 = arith.mulf %461, %471 : vector<8x32xf32>
    %482 = arith.addf %480, %481 : vector<8x32xf32>
    %483 = math.tanh %482 : vector<8x32xf32>
    %484 = arith.mulf %479, %483 : vector<8x32xf32>
    %c40 = arith.constant 40 : index
    %c0_166 = arith.constant 0 : index
    %485 = vector.load %arg18[%c40, %c0_166] : memref<64x32xf32, #tpu.memory_space<vmem>>, vector<8x32xf32>
    tpu.vector_store %arg18[%c40, %c0_166], %484 {strides = array<i32>} : memref<64x32xf32, #tpu.memory_space<vmem>>, vector<8x32xf32>,
    %486 = vector.extract_strided_slice %11 {offsets = [56, 0], sizes = [8, 128], strides = [1, 1]} : vector<64x128xf32> to vector<8x128xf32>
    %487 = arith.addf %486, %17 : vector<8x128xf32>
    %cst_167 = arith.constant dense<0.000000e+00> : vector<8x128xf32>
    %488 = tpu.matmul %449, %18, %cst_167 {dimension_numbers = #tpu.dot_dimension_numbers<[1], [0], [0], [1], [0, 0, 1, 1], [], []>} : vector<8x32xf32>, vector<32x128xf32>, vector<8x128xf32> -> vector<8x128xf32>
    %489 = arith.addf %487, %488 : vector<8x128xf32>
    %490 = vector.extract_strided_slice %489 {offsets = [0, 0], sizes = [8, 32], strides = [1, 1]} : vector<8x128xf32> to vector<8x32xf32>
    %cst_168 = arith.constant 0.000000e+00 : f32
    %491 = vector.broadcast %cst_168 : f32 to vector<8x32xf32>
    %492 = arith.subf %491, %490 : vector<8x32xf32>
    %493 = math.exp %492 : vector<8x32xf32>
    %cst_169 = arith.constant 1.000000e+00 : f32
    %494 = vector.broadcast %cst_169 : f32 to vector<8x32xf32>
    %495 = arith.addf %494, %493 : vector<8x32xf32>
    %cst_170 = arith.constant 1.000000e+00 : f32
    %496 = vector.broadcast %cst_170 : f32 to vector<8x32xf32>
    %497 = arith.divf %496, %495 : vector<8x32xf32>
    %498 = vector.extract_strided_slice %489 {offsets = [0, 32], sizes = [8, 32], strides = [1, 1]} : vector<8x128xf32> to vector<8x32xf32>
    %cst_171 = arith.constant 0.000000e+00 : f32
    %499 = vector.broadcast %cst_171 : f32 to vector<8x32xf32>
    %500 = arith.subf %499, %498 : vector<8x32xf32>
    %501 = math.exp %500 : vector<8x32xf32>
    %cst_172 = arith.constant 1.000000e+00 : f32
    %502 = vector.broadcast %cst_172 : f32 to vector<8x32xf32>
    %503 = arith.addf %502, %501 : vector<8x32xf32>
    %cst_173 = arith.constant 1.000000e+00 : f32
    %504 = vector.broadcast %cst_173 : f32 to vector<8x32xf32>
    %505 = arith.divf %504, %503 : vector<8x32xf32>
    %506 = vector.extract_strided_slice %489 {offsets = [0, 64], sizes = [8, 32], strides = [1, 1]} : vector<8x128xf32> to vector<8x32xf32>
    %507 = math.tanh %506 : vector<8x32xf32>
    %508 = vector.extract_strided_slice %489 {offsets = [0, 96], sizes = [8, 32], strides = [1, 1]} : vector<8x128xf32> to vector<8x32xf32>
    %cst_174 = arith.constant 0.000000e+00 : f32
    %509 = vector.broadcast %cst_174 : f32 to vector<8x32xf32>
    %510 = arith.subf %509, %508 : vector<8x32xf32>
    %511 = math.exp %510 : vector<8x32xf32>
    %cst_175 = arith.constant 1.000000e+00 : f32
    %512 = vector.broadcast %cst_175 : f32 to vector<8x32xf32>
    %513 = arith.addf %512, %511 : vector<8x32xf32>
    %cst_176 = arith.constant 1.000000e+00 : f32
    %514 = vector.broadcast %cst_176 : f32 to vector<8x32xf32>
    %515 = arith.divf %514, %513 : vector<8x32xf32>
    %516 = arith.mulf %505, %447 : vector<8x32xf32>
    %517 = arith.mulf %497, %507 : vector<8x32xf32>
    %518 = arith.addf %516, %517 : vector<8x32xf32>
    %519 = math.tanh %518 : vector<8x32xf32>
    %520 = arith.mulf %515, %519 : vector<8x32xf32>
    %cst_177 = arith.constant dense<0.000000e+00> : vector<8x128xf32>
    %521 = tpu.matmul %449, %20, %cst_177 {dimension_numbers = #tpu.dot_dimension_numbers<[1], [0], [0], [1], [0, 0, 1, 1], [], []>} : vector<8x32xf32>, vector<32x128xf32>, vector<8x128xf32> -> vector<8x128xf32>
    %522 = arith.addf %521, %23 : vector<8x128xf32>
    %cst_178 = arith.constant dense<0.000000e+00> : vector<8x128xf32>
    %523 = tpu.matmul %484, %19, %cst_178 {dimension_numbers = #tpu.dot_dimension_numbers<[1], [0], [0], [1], [0, 0, 1, 1], [], []>} : vector<8x32xf32>, vector<32x128xf32>, vector<8x128xf32> -> vector<8x128xf32>
    %524 = arith.addf %522, %523 : vector<8x128xf32>
    %525 = vector.extract_strided_slice %524 {offsets = [0, 0], sizes = [8, 32], strides = [1, 1]} : vector<8x128xf32> to vector<8x32xf32>
    %cst_179 = arith.constant 0.000000e+00 : f32
    %526 = vector.broadcast %cst_179 : f32 to vector<8x32xf32>
    %527 = arith.subf %526, %525 : vector<8x32xf32>
    %528 = math.exp %527 : vector<8x32xf32>
    %cst_180 = arith.constant 1.000000e+00 : f32
    %529 = vector.broadcast %cst_180 : f32 to vector<8x32xf32>
    %530 = arith.addf %529, %528 : vector<8x32xf32>
    %cst_181 = arith.constant 1.000000e+00 : f32
    %531 = vector.broadcast %cst_181 : f32 to vector<8x32xf32>
    %532 = arith.divf %531, %530 : vector<8x32xf32>
    %533 = vector.extract_strided_slice %524 {offsets = [0, 32], sizes = [8, 32], strides = [1, 1]} : vector<8x128xf32> to vector<8x32xf32>
    %cst_182 = arith.constant 0.000000e+00 : f32
    %534 = vector.broadcast %cst_182 : f32 to vector<8x32xf32>
    %535 = arith.subf %534, %533 : vector<8x32xf32>
    %536 = math.exp %535 : vector<8x32xf32>
    %cst_183 = arith.constant 1.000000e+00 : f32
    %537 = vector.broadcast %cst_183 : f32 to vector<8x32xf32>
    %538 = arith.addf %537, %536 : vector<8x32xf32>
    %cst_184 = arith.constant 1.000000e+00 : f32
    %539 = vector.broadcast %cst_184 : f32 to vector<8x32xf32>
    %540 = arith.divf %539, %538 : vector<8x32xf32>
    %541 = vector.extract_strided_slice %524 {offsets = [0, 64], sizes = [8, 32], strides = [1, 1]} : vector<8x128xf32> to vector<8x32xf32>
    %542 = math.tanh %541 : vector<8x32xf32>
    %543 = vector.extract_strided_slice %524 {offsets = [0, 96], sizes = [8, 32], strides = [1, 1]} : vector<8x128xf32> to vector<8x32xf32>
    %cst_185 = arith.constant 0.000000e+00 : f32
    %544 = vector.broadcast %cst_185 : f32 to vector<8x32xf32>
    %545 = arith.subf %544, %543 : vector<8x32xf32>
    %546 = math.exp %545 : vector<8x32xf32>
    %cst_186 = arith.constant 1.000000e+00 : f32
    %547 = vector.broadcast %cst_186 : f32 to vector<8x32xf32>
    %548 = arith.addf %547, %546 : vector<8x32xf32>
    %cst_187 = arith.constant 1.000000e+00 : f32
    %549 = vector.broadcast %cst_187 : f32 to vector<8x32xf32>
    %550 = arith.divf %549, %548 : vector<8x32xf32>
    %551 = arith.mulf %540, %482 : vector<8x32xf32>
    %552 = arith.mulf %532, %542 : vector<8x32xf32>
    %553 = arith.addf %551, %552 : vector<8x32xf32>
    %554 = math.tanh %553 : vector<8x32xf32>
    %555 = arith.mulf %550, %554 : vector<8x32xf32>
    %c48 = arith.constant 48 : index
    %c0_188 = arith.constant 0 : index
    %556 = vector.load %arg18[%c48, %c0_188] : memref<64x32xf32, #tpu.memory_space<vmem>>, vector<8x32xf32>
    tpu.vector_store %arg18[%c48, %c0_188], %555 {strides = array<i32>} : memref<64x32xf32, #tpu.memory_space<vmem>>, vector<8x32xf32>,
    %cst_189 = arith.constant dense<0.000000e+00> : vector<8x128xf32>
    %557 = tpu.matmul %520, %20, %cst_189 {dimension_numbers = #tpu.dot_dimension_numbers<[1], [0], [0], [1], [0, 0, 1, 1], [], []>} : vector<8x32xf32>, vector<32x128xf32>, vector<8x128xf32> -> vector<8x128xf32>
    %558 = arith.addf %557, %23 : vector<8x128xf32>
    %cst_190 = arith.constant dense<0.000000e+00> : vector<8x128xf32>
    %559 = tpu.matmul %555, %19, %cst_190 {dimension_numbers = #tpu.dot_dimension_numbers<[1], [0], [0], [1], [0, 0, 1, 1], [], []>} : vector<8x32xf32>, vector<32x128xf32>, vector<8x128xf32> -> vector<8x128xf32>
    %560 = arith.addf %558, %559 : vector<8x128xf32>
    %561 = vector.extract_strided_slice %560 {offsets = [0, 0], sizes = [8, 32], strides = [1, 1]} : vector<8x128xf32> to vector<8x32xf32>
    %cst_191 = arith.constant 0.000000e+00 : f32
    %562 = vector.broadcast %cst_191 : f32 to vector<8x32xf32>
    %563 = arith.subf %562, %561 : vector<8x32xf32>
    %564 = math.exp %563 : vector<8x32xf32>
    %cst_192 = arith.constant 1.000000e+00 : f32
    %565 = vector.broadcast %cst_192 : f32 to vector<8x32xf32>
    %566 = arith.addf %565, %564 : vector<8x32xf32>
    %cst_193 = arith.constant 1.000000e+00 : f32
    %567 = vector.broadcast %cst_193 : f32 to vector<8x32xf32>
    %568 = arith.divf %567, %566 : vector<8x32xf32>
    %569 = vector.extract_strided_slice %560 {offsets = [0, 32], sizes = [8, 32], strides = [1, 1]} : vector<8x128xf32> to vector<8x32xf32>
    %cst_194 = arith.constant 0.000000e+00 : f32
    %570 = vector.broadcast %cst_194 : f32 to vector<8x32xf32>
    %571 = arith.subf %570, %569 : vector<8x32xf32>
    %572 = math.exp %571 : vector<8x32xf32>
    %cst_195 = arith.constant 1.000000e+00 : f32
    %573 = vector.broadcast %cst_195 : f32 to vector<8x32xf32>
    %574 = arith.addf %573, %572 : vector<8x32xf32>
    %cst_196 = arith.constant 1.000000e+00 : f32
    %575 = vector.broadcast %cst_196 : f32 to vector<8x32xf32>
    %576 = arith.divf %575, %574 : vector<8x32xf32>
    %577 = vector.extract_strided_slice %560 {offsets = [0, 64], sizes = [8, 32], strides = [1, 1]} : vector<8x128xf32> to vector<8x32xf32>
    %578 = math.tanh %577 : vector<8x32xf32>
    %579 = vector.extract_strided_slice %560 {offsets = [0, 96], sizes = [8, 32], strides = [1, 1]} : vector<8x128xf32> to vector<8x32xf32>
    %cst_197 = arith.constant 0.000000e+00 : f32
    %580 = vector.broadcast %cst_197 : f32 to vector<8x32xf32>
    %581 = arith.subf %580, %579 : vector<8x32xf32>
    %582 = math.exp %581 : vector<8x32xf32>
    %cst_198 = arith.constant 1.000000e+00 : f32
    %583 = vector.broadcast %cst_198 : f32 to vector<8x32xf32>
    %584 = arith.addf %583, %582 : vector<8x32xf32>
    %cst_199 = arith.constant 1.000000e+00 : f32
    %585 = vector.broadcast %cst_199 : f32 to vector<8x32xf32>
    %586 = arith.divf %585, %584 : vector<8x32xf32>
    %587 = arith.mulf %576, %553 : vector<8x32xf32>
    %588 = arith.mulf %568, %578 : vector<8x32xf32>
    %589 = arith.addf %587, %588 : vector<8x32xf32>
    %590 = math.tanh %589 : vector<8x32xf32>
    %591 = arith.mulf %586, %590 : vector<8x32xf32>
    %c56 = arith.constant 56 : index
    %c0_200 = arith.constant 0 : index
    %592 = vector.load %arg18[%c56, %c0_200] : memref<64x32xf32, #tpu.memory_space<vmem>>, vector<8x32xf32>
    tpu.vector_store %arg18[%c56, %c0_200], %591 {strides = array<i32>} : memref<64x32xf32, #tpu.memory_space<vmem>>, vector<8x32xf32>,
    %c0_201 = arith.constant 0 : index
    %c0_202 = arith.constant 0 : index
    %c0_203 = arith.constant 0 : index
    %593 = vector.load %arg16[%c0_201, %c0_202, %c0_203] : memref<2x8x32xf32, #tpu.memory_space<vmem>>, vector<1x8x32xf32>
    %594 = vector.shape_cast %593 : vector<1x8x32xf32> to vector<8x32xf32>
    %595 = vector.shape_cast %520 : vector<8x32xf32> to vector<1x8x32xf32>
    tpu.vector_store %arg16[%c0_201, %c0_202, %c0_203], %595 {strides = array<i32>} : memref<2x8x32xf32, #tpu.memory_space<vmem>>, vector<1x8x32xf32>,
    %c0_204 = arith.constant 0 : index
    %c0_205 = arith.constant 0 : index
    %c0_206 = arith.constant 0 : index
    %596 = vector.load %arg17[%c0_204, %c0_205, %c0_206] : memref<2x8x32xf32, #tpu.memory_space<vmem>>, vector<1x8x32xf32>
    %597 = vector.shape_cast %596 : vector<1x8x32xf32> to vector<8x32xf32>
    %598 = vector.shape_cast %518 : vector<8x32xf32> to vector<1x8x32xf32>
    tpu.vector_store %arg17[%c0_204, %c0_205, %c0_206], %598 {strides = array<i32>} : memref<2x8x32xf32, #tpu.memory_space<vmem>>, vector<1x8x32xf32>,
    %c1 = arith.constant 1 : index
    %c0_207 = arith.constant 0 : index
    %c0_208 = arith.constant 0 : index
    %599 = vector.load %arg16[%c1, %c0_207, %c0_208] : memref<2x8x32xf32, #tpu.memory_space<vmem>>, vector<1x8x32xf32>
    %600 = vector.shape_cast %599 : vector<1x8x32xf32> to vector<8x32xf32>
    %601 = vector.shape_cast %591 : vector<8x32xf32> to vector<1x8x32xf32>
    tpu.vector_store %arg16[%c1, %c0_207, %c0_208], %601 {strides = array<i32>} : memref<2x8x32xf32, #tpu.memory_space<vmem>>, vector<1x8x32xf32>,
    %c1_209 = arith.constant 1 : index
    %c0_210 = arith.constant 0 : index
    %c0_211 = arith.constant 0 : index
    %602 = vector.load %arg17[%c1_209, %c0_210, %c0_211] : memref<2x8x32xf32, #tpu.memory_space<vmem>>, vector<1x8x32xf32>
    %603 = vector.shape_cast %602 : vector<1x8x32xf32> to vector<8x32xf32>
    %604 = vector.shape_cast %589 : vector<8x32xf32> to vector<1x8x32xf32>
    tpu.vector_store %arg17[%c1_209, %c0_210, %c0_211], %604 {strides = array<i32>} : memref<2x8x32xf32, #tpu.memory_space<vmem>>, vector<1x8x32xf32>,
    %c0_212 = arith.constant 0 : index
    %c0_213 = arith.constant 0 : index
    %605 = vector.load %arg18[%c0_212, %c0_213] : memref<64x32xf32, #tpu.memory_space<vmem>>, vector<64x32xf32>
    %c0_214 = arith.constant 0 : index
    %c0_215 = arith.constant 0 : index
    %606 = vector.load %arg11[%c0_214, %c0_215] : memref<32x16xf32, #tpu.memory_space<vmem>>, vector<32x16xf32>
    %cst_216 = arith.constant dense<0.000000e+00> : vector<64x16xf32>
    %607 = tpu.matmul %605, %606, %cst_216 {dimension_numbers = #tpu.dot_dimension_numbers<[1], [0], [0], [1], [0, 0, 1, 1], [], []>} : vector<64x32xf32>, vector<32x16xf32>, vector<64x16xf32> -> vector<64x16xf32>
    %c0_217 = arith.constant 0 : index
    %c0_218 = arith.constant 0 : index
    %608 = vector.load %arg12[%c0_217, %c0_218] : memref<1x16xf32, #tpu.memory_space<vmem>>, vector<1x16xf32>
    %609 = vector.broadcast %608 : vector<1x16xf32> to vector<64x16xf32>
    %610 = arith.addf %607, %609 : vector<64x16xf32>
    %611 = math.tanh %610 : vector<64x16xf32>
    %c0_219 = arith.constant 0 : index
    %c0_220 = arith.constant 0 : index
    %612 = vector.load %arg13[%c0_219, %c0_220] : memref<16x32xf32, #tpu.memory_space<vmem>>, vector<16x32xf32>
    %cst_221 = arith.constant dense<0.000000e+00> : vector<64x32xf32>
    %613 = tpu.matmul %611, %612, %cst_221 {dimension_numbers = #tpu.dot_dimension_numbers<[1], [0], [0], [1], [0, 0, 1, 1], [], []>} : vector<64x16xf32>, vector<16x32xf32>, vector<64x32xf32> -> vector<64x32xf32>
    %c0_222 = arith.constant 0 : index
    %c0_223 = arith.constant 0 : index
    %614 = vector.load %arg14[%c0_222, %c0_223] : memref<1x32xf32, #tpu.memory_space<vmem>>, vector<1x32xf32>
    %615 = vector.broadcast %614 : vector<1x32xf32> to vector<64x32xf32>
    %616 = arith.addf %613, %615 : vector<64x32xf32>
    %cst_224 = arith.constant dense<0xFF800000> : vector<64xf32>
    %617 = vector.multi_reduction <maximumf>, %616, %cst_224 [1] : vector<64x32xf32> to vector<64xf32>
    %618 = vector.shape_cast %617 : vector<64xf32> to vector<64x1xf32>
    %619 = vector.broadcast %618 : vector<64x1xf32> to vector<64x32xf32>
    %620 = arith.subf %616, %619 : vector<64x32xf32>
    %621 = math.exp %620 : vector<64x32xf32>
    %cst_225 = arith.constant dense<0.000000e+00> : vector<64xf32>
    %622 = vector.multi_reduction <add>, %621, %cst_225 [1] : vector<64x32xf32> to vector<64xf32>
    %623 = vector.shape_cast %622 : vector<64xf32> to vector<64x1xf32>
    %624 = math.log %623 : vector<64x1xf32>
    %625 = vector.broadcast %624 : vector<64x1xf32> to vector<64x32xf32>
    %626 = arith.subf %620, %625 : vector<64x32xf32>
    %c0_226 = arith.constant 0 : index
    %c0_227 = arith.constant 0 : index
    %627 = vector.load %arg15[%c0_226, %c0_227] : memref<64x32xf32, #tpu.memory_space<vmem>>, vector<64x32xf32>
    tpu.vector_store %arg15[%c0_226, %c0_227], %626 {strides = array<i32>} : memref<64x32xf32, #tpu.memory_space<vmem>>, vector<64x32xf32>,
    return
  }
  func.func @transform_0(%arg0: i32) -> (i32, i32) {
    %c0_i32 = arith.constant 0 : i32
    %c0_i32_0 = arith.constant 0 : i32
    %c0_i32_1 = arith.constant 0 : i32
    return %c0_i32, %c0_i32_0 : i32, i32
  }
  func.func @transform_1(%arg0: i32) -> (i32, i32) {
    %c0_i32 = arith.constant 0 : i32
    %c0_i32_0 = arith.constant 0 : i32
    %c0_i32_1 = arith.constant 0 : i32
    return %c0_i32, %c0_i32_0 : i32, i32
  }
  func.func @transform_2(%arg0: i32) -> (i32, i32) {
    %c0_i32 = arith.constant 0 : i32
    %c0_i32_0 = arith.constant 0 : i32
    %c0_i32_1 = arith.constant 0 : i32
    return %c0_i32, %c0_i32_0 : i32, i32
  }
  func.func @transform_3(%arg0: i32) -> (i32, i32) {
    %c0_i32 = arith.constant 0 : i32
    %c0_i32_0 = arith.constant 0 : i32
    %c0_i32_1 = arith.constant 0 : i32
    return %c0_i32, %c0_i32_0 : i32, i32
  }
  func.func @transform_4(%arg0: i32) -> (i32, i32) {
    %c0_i32 = arith.constant 0 : i32
    %c0_i32_0 = arith.constant 0 : i32
    %c0_i32_1 = arith.constant 0 : i32
    return %c0_i32, %c0_i32_0 : i32, i32
  }
  func.func @transform_5(%arg0: i32) -> (i32, i32) {
    %c0_i32 = arith.constant 0 : i32
    %c0_i32_0 = arith.constant 0 : i32
    %c0_i32_1 = arith.constant 0 : i32
    return %c0_i32, %c0_i32_0 : i32, i32
  }
  func.func @transform_6(%arg0: i32) -> (i32, i32) {
    %c0_i32 = arith.constant 0 : i32
    %c0_i32_0 = arith.constant 0 : i32
    %c0_i32_1 = arith.constant 0 : i32
    return %c0_i32, %c0_i32_0 : i32, i32
  }
  func.func @transform_7(%arg0: i32) -> (i32, i32) {
    %c0_i32 = arith.constant 0 : i32
    %c0_i32_0 = arith.constant 0 : i32
    %c0_i32_1 = arith.constant 0 : i32
    return %c0_i32, %c0_i32_0 : i32, i32
  }
  func.func @transform_8(%arg0: i32) -> (i32, i32) {
    %c0_i32 = arith.constant 0 : i32
    %c0_i32_0 = arith.constant 0 : i32
    %c0_i32_1 = arith.constant 0 : i32
    return %c0_i32, %c0_i32_0 : i32, i32
  }
  func.func @transform_9(%arg0: i32) -> (i32, i32) {
    %c0_i32 = arith.constant 0 : i32
    %c0_i32_0 = arith.constant 0 : i32
    %c0_i32_1 = arith.constant 0 : i32
    return %c0_i32, %c0_i32_0 : i32, i32
  }
  func.func @transform_10(%arg0: i32) -> (i32, i32) {
    %c0_i32 = arith.constant 0 : i32
    %c0_i32_0 = arith.constant 0 : i32
    %c0_i32_1 = arith.constant 0 : i32
    return %c0_i32, %c0_i32_0 : i32, i32
  }
  func.func @transform_11(%arg0: i32) -> (i32, i32) {
    %c0_i32 = arith.constant 0 : i32
    %c0_i32_0 = arith.constant 0 : i32
    %c0_i32_1 = arith.constant 0 : i32
    return %c0_i32, %c0_i32_0 : i32, i32
  }
  func.func @transform_12(%arg0: i32) -> (i32, i32) {
    %c0_i32 = arith.constant 0 : i32
    %c0_i32_0 = arith.constant 0 : i32
    %c0_i32_1 = arith.constant 0 : i32
    return %c0_i32, %c0_i32_0 : i32, i32
  }
  func.func @transform_13(%arg0: i32) -> (i32, i32) {
    %c0_i32 = arith.constant 0 : i32
    %c0_i32_0 = arith.constant 0 : i32
    %c0_i32_1 = arith.constant 0 : i32
    return %c0_i32, %c0_i32_0 : i32, i32
  }
  func.func @transform_14(%arg0: i32) -> (i32, i32) {
    %c0_i32 = arith.constant 0 : i32
    %c0_i32_0 = arith.constant 0 : i32
    %c0_i32_1 = arith.constant 0 : i32
    return %c0_i32, %c0_i32_0 : i32, i32
  }
  func.func @transform_15(%arg0: i32) -> (i32, i32, i32) {
    %c0_i32 = arith.constant 0 : i32
    %c0_i32_0 = arith.constant 0 : i32
    %c0_i32_1 = arith.constant 0 : i32
    %c0_i32_2 = arith.constant 0 : i32
    return %c0_i32, %c0_i32_0, %c0_i32_1 : i32, i32, i32
  }
  func.func @transform_16(%arg0: i32) -> (i32, i32, i32) {
    %c0_i32 = arith.constant 0 : i32
    %c0_i32_0 = arith.constant 0 : i32
    %c0_i32_1 = arith.constant 0 : i32
    %c0_i32_2 = arith.constant 0 : i32
    return %c0_i32, %c0_i32_0, %c0_i32_1 : i32, i32, i32
  }
}

</mosaic_0001>

<llo_original>
// kernel: dummy_decoder_forward.1
$region0: #{dummy_decoder_forward.1}
  #allocation0 [shape = 'u32[]', space=smem, size = 0x4, offset = 0x4, fixed_abs, tag = 'smem constant byte address 0x4 - core index']
  #allocation1 [shape = 'u32[72,128]{1,0:T(1,128)}', space=vmem, size = 0x9000, scoped, tag = 'internal scratch']
  #allocation2 [shape = 'f32[64,32]{1,0:T(8,128)}', space=vmem, size = 0x8000, scoped, tag = 'scratch operand']
  %s0 = inlined_call_operand.vmem [shape: s32[64,1], index: 0, kind: input, shape index: {}]
  %s1 = inlined_call_operand.vmem [shape: f32[8,8], index: 1, kind: input, shape index: {}]
  %s2 = inlined_call_operand.vmem [shape: f32[32,128], index: 2, kind: input, shape index: {}]
  %s3 = inlined_call_operand.vmem [shape: f32[32,128], index: 3, kind: input, shape index: {}]
  %s4 = inlined_call_operand.vmem [shape: f32[8,128], index: 4, kind: input, shape index: {}]
  %s5 = inlined_call_operand.vmem [shape: f32[32,128], index: 5, kind: input, shape index: {}]
  %s6 = inlined_call_operand.vmem [shape: f32[1,128], index: 6, kind: input, shape index: {}]
  %s7 = inlined_call_operand.vmem [shape: f32[32,128], index: 7, kind: input, shape index: {}]
  %s8 = inlined_call_operand.vmem [shape: f32[32,128], index: 8, kind: input, shape index: {}]
  %s9 = inlined_call_operand.vmem [shape: f32[1,128], index: 9, kind: input, shape index: {}]
  %s10 = inlined_call_operand.vmem [shape: f32[32,16], index: 10, kind: input, shape index: {}]
  %s11 = inlined_call_operand.vmem [shape: f32[1,16], index: 11, kind: input, shape index: {}]
  %s12 = inlined_call_operand.vmem [shape: f32[16,32], index: 12, kind: input, shape index: {}]
  %s13 = inlined_call_operand.vmem [shape: f32[1,32], index: 13, kind: input, shape index: {}]
  %s14 = inlined_call_operand.vmem [shape: f32[64,32], index: 14, kind: output, shape index: {0}]
  %s15 = inlined_call_operand.vmem [shape: f32[2,8,32], index: 15, kind: output, shape index: {1}]
  %s16 = inlined_call_operand.vmem [shape: f32[2,8,32], index: 16, kind: output, shape index: {2}]
  %17 = xla_tuple %s14, %s15, %s16
  %s18 = sld [smem:[#allocation0]]
  $region82: #{dummy_decoder_forward.1} parent=0
    _
  %s20 = ssub.s32 1, %s18
  %s21 = scalar_select 0, %s20, %s18
  // Predicated region
  $region2: #{dummy_decoder_forward.1} parent=0 // pred_check
    _
  $region3: #{dummy_decoder_forward.1} parent=0 // pred_check_branch
    %23 = sbr.rel (0) target = $region5
  $region4: #{dummy_decoder_forward.1} parent=0 // pred_region
    _
  $region5: #{dummy_decoder_forward.1} parent=0 // pred_fallthru
    _
  // Predicated region
  $region6: #{dummy_decoder_forward.1} parent=0 // pred_check
    _
  $region7: #{dummy_decoder_forward.1} parent=0 // pred_check_branch
    %25 = sbr.rel (0) target = $region9
  $region8: #{dummy_decoder_forward.1} parent=0 // pred_region
    _
  $region9: #{dummy_decoder_forward.1} parent=0 // pred_fallthru
    _
  // Predicated region
  $region10: #{dummy_decoder_forward.1} parent=0 // pred_check
    _
  $region11: #{dummy_decoder_forward.1} parent=0 // pred_check_branch
    %27 = sbr.rel (0) target = $region13
  $region12: #{dummy_decoder_forward.1} parent=0 // pred_region
    _
  $region13: #{dummy_decoder_forward.1} parent=0 // pred_fallthru
    _
  // Predicated region
  $region14: #{dummy_decoder_forward.1} parent=0 // pred_check
    _
  $region15: #{dummy_decoder_forward.1} parent=0 // pred_check_branch
    %29 = sbr.rel (0) target = $region17
  $region16: #{dummy_decoder_forward.1} parent=0 // pred_region
    _
  $region17: #{dummy_decoder_forward.1} parent=0 // pred_fallthru
    _
  // Predicated region
  $region18: #{dummy_decoder_forward.1} parent=0 // pred_check
    _
  $region19: #{dummy_decoder_forward.1} parent=0 // pred_check_branch
    %31 = sbr.rel (0) target = $region21
  $region20: #{dummy_decoder_forward.1} parent=0 // pred_region
    _
  $region21: #{dummy_decoder_forward.1} parent=0 // pred_fallthru
    _
  // Predicated region
  $region22: #{dummy_decoder_forward.1} parent=0 // pred_check
    _
  $region23: #{dummy_decoder_forward.1} parent=0 // pred_check_branch
    %33 = sbr.rel (0) target = $region25
  $region24: #{dummy_decoder_forward.1} parent=0 // pred_region
    _
  $region25: #{dummy_decoder_forward.1} parent=0 // pred_fallthru
    _
  // Predicated region
  $region26: #{dummy_decoder_forward.1} parent=0 // pred_check
    _
  $region27: #{dummy_decoder_forward.1} parent=0 // pred_check_branch
    %35 = sbr.rel (0) target = $region29
  $region28: #{dummy_decoder_forward.1} parent=0 // pred_region
    _
  $region29: #{dummy_decoder_forward.1} parent=0 // pred_fallthru
    _
  // Predicated region
  $region30: #{dummy_decoder_forward.1} parent=0 // pred_check
    _
  $region31: #{dummy_decoder_forward.1} parent=0 // pred_check_branch
    %37 = sbr.rel (0) target = $region33
  $region32: #{dummy_decoder_forward.1} parent=0 // pred_region
    _
  $region33: #{dummy_decoder_forward.1} parent=0 // pred_fallthru
    _
  // Predicated region
  $region34: #{dummy_decoder_forward.1} parent=0 // pred_check
    _
  $region35: #{dummy_decoder_forward.1} parent=0 // pred_check_branch
    %39 = sbr.rel (0) target = $region37
  $region36: #{dummy_decoder_forward.1} parent=0 // pred_region
    _
  $region37: #{dummy_decoder_forward.1} parent=0 // pred_fallthru
    _
  // Predicated region
  $region38: #{dummy_decoder_forward.1} parent=0 // pred_check
    _
  $region39: #{dummy_decoder_forward.1} parent=0 // pred_check_branch
    %41 = sbr.rel (0) target = $region41
  $region40: #{dummy_decoder_forward.1} parent=0 // pred_region
    _
  $region41: #{dummy_decoder_forward.1} parent=0 // pred_fallthru
    _
  // Predicated region
  $region42: #{dummy_decoder_forward.1} parent=0 // pred_check
    _
  $region43: #{dummy_decoder_forward.1} parent=0 // pred_check_branch
    %43 = sbr.rel (0) target = $region45
  $region44: #{dummy_decoder_forward.1} parent=0 // pred_region
    _
  $region45: #{dummy_decoder_forward.1} parent=0 // pred_fallthru
    _
  // Predicated region
  $region46: #{dummy_decoder_forward.1} parent=0 // pred_check
    _
  $region47: #{dummy_decoder_forward.1} parent=0 // pred_check_branch
    %45 = sbr.rel (0) target = $region49
  $region48: #{dummy_decoder_forward.1} parent=0 // pred_region
    _
  $region49: #{dummy_decoder_forward.1} parent=0 // pred_fallthru
    _
  // Predicated region
  $region50: #{dummy_decoder_forward.1} parent=0 // pred_check
    _
  $region51: #{dummy_decoder_forward.1} parent=0 // pred_check_branch
    %47 = sbr.rel (0) target = $region53
  $region52: #{dummy_decoder_forward.1} parent=0 // pred_region
    _
  $region53: #{dummy_decoder_forward.1} parent=0 // pred_fallthru
    _
  // Predicated region
  $region54: #{dummy_decoder_forward.1} parent=0 // pred_check
    _
  $region55: #{dummy_decoder_forward.1} parent=0 // pred_check_branch
    %49 = sbr.rel (0) target = $region57
  $region56: #{dummy_decoder_forward.1} parent=0 // pred_region
    _
  $region57: #{dummy_decoder_forward.1} parent=0 // pred_fallthru
    _
  %v50 = vld [vmem:[%s0] sm:$0xff]
  %v51 = vld [vmem:[%s0 + $0x8] sm:$0xff]
  %v52 = vld [vmem:[%s0 + $0x10] sm:$0xff]
  %v53 = vld [vmem:[%s0 + $0x18] sm:$0xff]
  %v54 = vld [vmem:[%s0 + $0x20] sm:$0xff]
  %v55 = vld [vmem:[%s0 + $0x28] sm:$0xff]
  %v56 = vld [vmem:[%s0 + $0x30] sm:$0xff]
  %v57 = vld [vmem:[%s0 + $0x38] sm:$0xff]
  %v58 = vlaneseq
  %v59 = vand.u32 %v58, 127
  %60 = vset.pattern.permute.xlu0 0
  %61 = vperm.xlu0 %60, %v50
  %v62 = vpop.permute.xlu0 %61
  %63 = vset.pattern.permute.xlu0 0
  %64 = vperm.xlu0 %63, %v51
  %v65 = vpop.permute.xlu0 %64
  %66 = vset.pattern.permute.xlu0 0
  %67 = vperm.xlu0 %66, %v52
  %v68 = vpop.permute.xlu0 %67
  %69 = vset.pattern.permute.xlu0 0
  %70 = vperm.xlu0 %69, %v53
  %v71 = vpop.permute.xlu0 %70
  %72 = vset.pattern.permute.xlu0 0
  %73 = vperm.xlu0 %72, %v54
  %v74 = vpop.permute.xlu0 %73
  %75 = vset.pattern.permute.xlu0 0
  %76 = vperm.xlu0 %75, %v55
  %v77 = vpop.permute.xlu0 %76
  %78 = vset.pattern.permute.xlu0 0
  %79 = vperm.xlu0 %78, %v56
  %v80 = vpop.permute.xlu0 %79
  %81 = vset.pattern.permute.xlu0 0
  %82 = vperm.xlu0 %81, %v57
  %v83 = vpop.permute.xlu0 %82
  %vm84 = vcmp.eq.s32.totalorder %v62, %v59
  %vm85 = vcmp.eq.s32.totalorder %v65, %v59
  %vm86 = vcmp.eq.s32.totalorder %v68, %v59
  %vm87 = vcmp.eq.s32.totalorder %v71, %v59
  %vm88 = vcmp.eq.s32.totalorder %v74, %v59
  %vm89 = vcmp.eq.s32.totalorder %v77, %v59
  %vm90 = vcmp.eq.s32.totalorder %v80, %v59
  %vm91 = vcmp.eq.s32.totalorder %v83, %v59
  %v92 = vsel %vm84, 1.0, 0.0
  %v93 = vsel %vm85, 1.0, 0.0
  %v94 = vsel %vm86, 1.0, 0.0
  %v95 = vsel %vm87, 1.0, 0.0
  %v96 = vsel %vm88, 1.0, 0.0
  %v97 = vsel %vm89, 1.0, 0.0
  %v98 = vsel %vm90, 1.0, 0.0
  %v99 = vsel %vm91, 1.0, 0.0
  %v100 = vld [vmem:[%s2] sm:$0xff]
  %v101 = vld [vmem:[%s2 + $0x8] sm:$0xff]
  %v102 = vld [vmem:[%s2 + $0x10] sm:$0xff]
  %v103 = vld [vmem:[%s2 + $0x18] sm:$0xff]
  %v104 = vld [vmem:[%s3] sm:$0xff]
  %v105 = vld [vmem:[%s3 + $0x8] sm:$0xff]
  %v106 = vld [vmem:[%s3 + $0x10] sm:$0xff]
  %v107 = vld [vmem:[%s3 + $0x18] sm:$0xff]
  %vm108 = vcmask 261120
  %v110 = vsel %vm108, %v92, 0
  %v113 = vsel %vm108, %v93, 0
  %v116 = vsel %vm108, %v94, 0
  %v119 = vsel %vm108, %v95, 0
  %v122 = vsel %vm108, %v96, 0
  %v125 = vsel %vm108, %v97, 0
  %v128 = vsel %vm108, %v98, 0
  %v131 = vsel %vm108, %v99, 0
  %133 = vmatpush.msra.mxu0 0.0
  %134 = vmatpush.msra.mxu0 0.0
  %135 = vmatpush.msra.mxu0 0.0
  %136 = vmatpush.msra.mxu0 0.0
  %137 = vmatpush.msra.mxu0 0.0
  %138 = vmatpush.msra.mxu0 0.0
  %139 = vmatpush.msra.mxu0 0.0
  %140 = vmatpush.msra.mxu0 0.0
  %141 = vmatpush.msra.mxu0 0.0
  %142 = vmatpush.msra.mxu0 0.0
  %143 = vmatpush.msra.mxu0 0.0
  %144 = vmatpush.msra.mxu0 0.0
  %145 = vmatpush.msra.mxu0 %v107
  %146 = vmatpush.msra.mxu0 %v106
  %147 = vmatpush.msra.mxu0 %v105
  %148 = vmatpush.msra.mxu0 %v104
  %149 = vmatmul.f32.gmra.mxu0 %v110
  %v150 = vpop.f32.mrf.mxu0
  %v151 = vadd.f32 0.0, %v150
  %152 = vmatmul.f32.gmra.mxu0 %v113
  %v153 = vpop.f32.mrf.mxu0
  %v154 = vadd.f32 0.0, %v153
  %155 = vmatmul.f32.gmra.mxu0 %v116
  %v156 = vpop.f32.mrf.mxu0
  %v157 = vadd.f32 0.0, %v156
  %158 = vmatmul.f32.gmra.mxu0 %v119
  %v159 = vpop.f32.mrf.mxu0
  %v160 = vadd.f32 0.0, %v159
  %161 = vmatmul.f32.gmra.mxu0 %v122
  %v162 = vpop.f32.mrf.mxu0
  %v163 = vadd.f32 0.0, %v162
  %164 = vmatmul.f32.gmra.mxu0 %v125
  %v165 = vpop.f32.mrf.mxu0
  %v166 = vadd.f32 0.0, %v165
  %167 = vmatmul.f32.gmra.mxu0 %v128
  %v168 = vpop.f32.mrf.mxu0
  %v169 = vadd.f32 0.0, %v168
  %170 = vmatmul.f32.gmra.mxu0 %v131
  %v171 = vpop.f32.mrf.mxu0
  %v172 = vadd.f32 0.0, %v171
  %173 = vdwg.mxu0
  %174 = vmatpush.msra.mxu0 0.0
  %175 = vmatpush.msra.mxu0 0.0
  %176 = vmatpush.msra.mxu0 0.0
  %177 = vmatpush.msra.mxu0 0.0
  %178 = vmatpush.msra.mxu0 0.0
  %179 = vmatpush.msra.mxu0 0.0
  %180 = vmatpush.msra.mxu0 0.0
  %181 = vmatpush.msra.mxu0 0.0
  %182 = vmatpush.msra.mxu0 0.0
  %183 = vmatpush.msra.mxu0 0.0
  %184 = vmatpush.msra.mxu0 0.0
  %185 = vmatpush.msra.mxu0 0.0
  %186 = vmatpush.msra.mxu0 %v103
  %187 = vmatpush.msra.mxu0 %v102
  %188 = vmatpush.msra.mxu0 %v101
  %189 = vmatpush.msra.mxu0 %v100
  %190 = vmatmul.f32.gmra.mxu0 %v110
  %v191 = vpop.f32.mrf.mxu0
  %v192 = vadd.f32 %v151, %v191
  %193 = vmatmul.f32.gmra.mxu0 %v113
  %v194 = vpop.f32.mrf.mxu0
  %v195 = vadd.f32 %v154, %v194
  %196 = vmatmul.f32.gmra.mxu0 %v116
  %v197 = vpop.f32.mrf.mxu0
  %v198 = vadd.f32 %v157, %v197
  %199 = vmatmul.f32.gmra.mxu0 %v119
  %v200 = vpop.f32.mrf.mxu0
  %v201 = vadd.f32 %v160, %v200
  %202 = vmatmul.f32.gmra.mxu0 %v122
  %v203 = vpop.f32.mrf.mxu0
  %v204 = vadd.f32 %v163, %v203
  %205 = vmatmul.f32.gmra.mxu0 %v125
  %v206 = vpop.f32.mrf.mxu0
  %v207 = vadd.f32 %v166, %v206
  %208 = vmatmul.f32.gmra.mxu0 %v128
  %v209 = vpop.f32.mrf.mxu0
  %v210 = vadd.f32 %v169, %v209
  %211 = vmatmul.f32.gmra.mxu0 %v131
  %v212 = vpop.f32.mrf.mxu0
  %v213 = vadd.f32 %v172, %v212
  %214 = vdwg.mxu0
  %v215 = vld [vmem:[%s1] sm:$0xff]
  %v216 = vld [vmem:[%s4] sm:$0xff]
  %v217 = vld [vmem:[%s6] sm:$0x1]
  %v219 = vperm.slane %v217, 0
  %vm221 = vcmask 64512
  %v223 = vsel %vm221, %v215, 0
  %225 = vmatpush.msra.mxu0 0.0
  %226 = vmatpush.msra.mxu0 0.0
  %227 = vmatpush.msra.mxu0 0.0
  %228 = vmatpush.msra.mxu0 0.0
  %229 = vmatpush.msra.mxu0 0.0
  %230 = vmatpush.msra.mxu0 0.0
  %231 = vmatpush.msra.mxu0 0.0
  %232 = vmatpush.msra.mxu0 0.0
  %233 = vmatpush.msra.mxu0 0.0
  %234 = vmatpush.msra.mxu0 0.0
  %235 = vmatpush.msra.mxu0 0.0
  %236 = vmatpush.msra.mxu0 0.0
  %237 = vmatpush.msra.mxu0 0.0
  %238 = vmatpush.msra.mxu0 0.0
  %239 = vmatpush.msra.mxu0 0.0
  %240 = vmatpush.msra.mxu0 %v216
  %241 = vmatmul.f32.gmra.mxu0 %v223
  %v242 = vpop.f32.mrf.mxu0
  %v243 = vadd.f32 %v219, %v242
  %244 = vdwg.mxu0
  %v245 = vld [vmem:[%s5] sm:$0xff]
  %v246 = vld [vmem:[%s5 + $0x8] sm:$0xff]
  %v247 = vld [vmem:[%s5 + $0x10] sm:$0xff]
  %v248 = vld [vmem:[%s5 + $0x18] sm:$0xff]
  %v249 = vld [vmem:[%s8] sm:$0xff]
  %v250 = vld [vmem:[%s8 + $0x8] sm:$0xff]
  %v251 = vld [vmem:[%s8 + $0x10] sm:$0xff]
  %v252 = vld [vmem:[%s8 + $0x18] sm:$0xff]
  %v253 = vld [vmem:[%s7] sm:$0xff]
  %v254 = vld [vmem:[%s7 + $0x8] sm:$0xff]
  %v255 = vld [vmem:[%s7 + $0x10] sm:$0xff]
  %v256 = vld [vmem:[%s7 + $0x18] sm:$0xff]
  %v257 = vld [vmem:[%s9] sm:$0x1]
  %v259 = vperm.slane %v257, 0
  %v261 = vadd.f32 %v192, %v243
  %v263 = vsel %vm108, 0.0, 0
  %265 = vmatpush.msra.mxu0 0.0
  %266 = vmatpush.msra.mxu0 0.0
  %267 = vmatpush.msra.mxu0 0.0
  %268 = vmatpush.msra.mxu0 0.0
  %269 = vmatpush.msra.mxu0 0.0
  %270 = vmatpush.msra.mxu0 0.0
  %271 = vmatpush.msra.mxu0 0.0
  %272 = vmatpush.msra.mxu0 0.0
  %273 = vmatpush.msra.mxu0 0.0
  %274 = vmatpush.msra.mxu0 0.0
  %275 = vmatpush.msra.mxu0 0.0
  %276 = vmatpush.msra.mxu0 0.0
  %277 = vmatpush.msra.mxu0 %v248
  %278 = vmatpush.msra.mxu0 %v247
  %279 = vmatpush.msra.mxu0 %v246
  %280 = vmatpush.msra.mxu0 %v245
  %281 = vmatmul.f32.gmra.mxu0 %v263
  %v282 = vpop.f32.mrf.mxu0
  %v283 = vadd.f32 0.0, %v282
  %284 = vdwg.mxu0
  %v285 = vadd.f32 %v261, %v283
  %v286 = vsub.f32 0.0, %v285
  %v287 = vmul.f32 %v286, 1.442695
  %v288 = vpow.pop %v287
  %v289 = vadd.f32 %v288, 1.0
  %v290 = vrcp.pop %v289
  %v291 = vmul.f32 %v289, %v290
  %v292 = vsub.f32 1.0, %v291
  %v293 = vmul.f32 %v290, %v292
  %v294 = vadd.f32 %v290, %v293
  %vm295 = vweird.f32 %v289
  %vm296 = vweird.f32 %v290
  %vm297 = vmor %vm295, %vm296
  %v298 = vsel %vm297, %v290, %v294
  %v299 = vand.u32 2147483647, %v289
  %vm300 = vcmp.eq.f32.partialorder %v299, 8.507059e+37
  %v301 = vand.u32 %v289, 2147483648
  %v302 = vor.u32 1.1754944e-38, %v301
  %v303 = vsel %vm300, %v302, %v298
  %v304 = vmul.f32 1.0, %v303
  %v305 = vtanh.pop %v285
  %v306 = vmul.f32 %v304, 0.0
  %308 = vrot.lane.b32.xlu0 %v305, 64
  %v309 = vpop.permute.xlu0 %308
  %v311 = vmul.f32 %v304, %v309
  %313 = vrot.lane.b32.xlu0 %v311, 32
  %v314 = vpop.permute.xlu0 %313
  %v316 = vadd.f32 %v306, %v314
  %v317 = vtanh.pop %v316
  %319 = vrot.lane.b32.xlu0 %v317, 64
  %v320 = vpop.permute.xlu0 %319
  %v322 = vmul.f32 %v304, %v320
  %v323 = vadd.f32 %v195, %v243
  %325 = vrot.lane.b32.xlu0 %v322, 32
  %v326 = vpop.permute.xlu0 %325
  %v327 = vsel %vm108, %v326, 0
  %329 = vmatpush.msra.mxu0 0.0
  %330 = vmatpush.msra.mxu0 0.0
  %331 = vmatpush.msra.mxu0 0.0
  %332 = vmatpush.msra.mxu0 0.0
  %333 = vmatpush.msra.mxu0 0.0
  %334 = vmatpush.msra.mxu0 0.0
  %335 = vmatpush.msra.mxu0 0.0
  %336 = vmatpush.msra.mxu0 0.0
  %337 = vmatpush.msra.mxu0 0.0
  %338 = vmatpush.msra.mxu0 0.0
  %339 = vmatpush.msra.mxu0 0.0
  %340 = vmatpush.msra.mxu0 0.0
  %341 = vmatpush.msra.mxu0 %v248
  %342 = vmatpush.msra.mxu0 %v247
  %343 = vmatpush.msra.mxu0 %v246
  %344 = vmatpush.msra.mxu0 %v245
  %345 = vmatmul.f32.gmra.mxu0 %v327
  %v346 = vpop.f32.mrf.mxu0
  %v347 = vadd.f32 0.0, %v346
  %348 = vdwg.mxu0
  %v349 = vadd.f32 %v323, %v347
  %v350 = vsub.f32 0.0, %v349
  %v351 = vmul.f32 %v350, 1.442695
  %v352 = vpow.pop %v351
  %v353 = vadd.f32 %v352, 1.0
  %v354 = vrcp.pop %v353
  %v355 = vmul.f32 %v353, %v354
  %v356 = vsub.f32 1.0, %v355
  %v357 = vmul.f32 %v354, %v356
  %v358 = vadd.f32 %v354, %v357
  %vm359 = vweird.f32 %v353
  %vm360 = vweird.f32 %v354
  %vm361 = vmor %vm359, %vm360
  %v362 = vsel %vm361, %v354, %v358
  %v363 = vand.u32 2147483647, %v353
  %vm364 = vcmp.eq.f32.partialorder %v363, 8.507059e+37
  %v365 = vand.u32 %v353, 2147483648
  %v366 = vor.u32 1.1754944e-38, %v365
  %v367 = vsel %vm364, %v366, %v362
  %v368 = vmul.f32 1.0, %v367
  %v369 = vtanh.pop %v349
  %v370 = vmul.f32 %v368, %v316
  %372 = vrot.lane.b32.xlu0 %v369, 64
  %v373 = vpop.permute.xlu0 %372
  %v375 = vmul.f32 %v368, %v373
  %377 = vrot.lane.b32.xlu0 %v375, 32
  %v378 = vpop.permute.xlu0 %377
  %v380 = vadd.f32 %v370, %v378
  %v381 = vtanh.pop %v380
  %383 = vrot.lane.b32.xlu0 %v381, 64
  %v384 = vpop.permute.xlu0 %383
  %v386 = vmul.f32 %v368, %v384
  %387 = vmatpush.msra.mxu0 0.0
  %388 = vmatpush.msra.mxu0 0.0
  %389 = vmatpush.msra.mxu0 0.0
  %390 = vmatpush.msra.mxu0 0.0
  %391 = vmatpush.msra.mxu0 0.0
  %392 = vmatpush.msra.mxu0 0.0
  %393 = vmatpush.msra.mxu0 0.0
  %394 = vmatpush.msra.mxu0 0.0
  %395 = vmatpush.msra.mxu0 0.0
  %396 = vmatpush.msra.mxu0 0.0
  %397 = vmatpush.msra.mxu0 0.0
  %398 = vmatpush.msra.mxu0 0.0
  %399 = vmatpush.msra.mxu0 %v256
  %400 = vmatpush.msra.mxu0 %v255
  %401 = vmatpush.msra.mxu0 %v254
  %402 = vmatpush.msra.mxu0 %v253
  %403 = vmatmul.f32.gmra.mxu0 %v327
  %v404 = vpop.f32.mrf.mxu0
  %v405 = vadd.f32 %v259, %v404
  %406 = vdwg.mxu0
  %407 = vmatpush.msra.mxu0 0.0
  %408 = vmatpush.msra.mxu0 0.0
  %409 = vmatpush.msra.mxu0 0.0
  %410 = vmatpush.msra.mxu0 0.0
  %411 = vmatpush.msra.mxu0 0.0
  %412 = vmatpush.msra.mxu0 0.0
  %413 = vmatpush.msra.mxu0 0.0
  %414 = vmatpush.msra.mxu0 0.0
  %415 = vmatpush.msra.mxu0 0.0
  %416 = vmatpush.msra.mxu0 0.0
  %417 = vmatpush.msra.mxu0 0.0
  %418 = vmatpush.msra.mxu0 0.0
  %419 = vmatpush.msra.mxu0 %v252
  %420 = vmatpush.msra.mxu0 %v251
  %421 = vmatpush.msra.mxu0 %v250
  %422 = vmatpush.msra.mxu0 %v249
  %423 = vmatmul.f32.gmra.mxu0 %v263
  %v424 = vpop.f32.mrf.mxu0
  %v425 = vadd.f32 0.0, %v424
  %426 = vdwg.mxu0
  %v427 = vadd.f32 %v405, %v425
  %v428 = vsub.f32 0.0, %v427
  %v429 = vmul.f32 %v428, 1.442695
  %v430 = vpow.pop %v429
  %v431 = vadd.f32 %v430, 1.0
  %v432 = vrcp.pop %v431
  %v433 = vmul.f32 %v431, %v432
  %v434 = vsub.f32 1.0, %v433
  %v435 = vmul.f32 %v432, %v434
  %v436 = vadd.f32 %v432, %v435
  %vm437 = vweird.f32 %v431
  %vm438 = vweird.f32 %v432
  %vm439 = vmor %vm437, %vm438
  %v440 = vsel %vm439, %v432, %v436
  %v441 = vand.u32 2147483647, %v431
  %vm442 = vcmp.eq.f32.partialorder %v441, 8.507059e+37
  %v443 = vand.u32 %v431, 2147483648
  %v444 = vor.u32 1.1754944e-38, %v443
  %v445 = vsel %vm442, %v444, %v440
  %v446 = vmul.f32 1.0, %v445
  %v447 = vtanh.pop %v427
  %v448 = vmul.f32 %v446, 0.0
  %450 = vrot.lane.b32.xlu0 %v447, 64
  %v451 = vpop.permute.xlu0 %450
  %v453 = vmul.f32 %v446, %v451
  %455 = vrot.lane.b32.xlu0 %v453, 32
  %v456 = vpop.permute.xlu0 %455
  %v458 = vadd.f32 %v448, %v456
  %v459 = vtanh.pop %v458
  %461 = vrot.lane.b32.xlu0 %v459, 64
  %v462 = vpop.permute.xlu0 %461
  %v464 = vmul.f32 %v446, %v462
  %466 = vrot.lane.b32.xlu0 %v464, 32
  %v467 = vpop.permute.xlu0 %466
  %469 = vst.msk [vmem:[#allocation2] sm:$0xff] %vm108, %v467
  %v470 = vadd.f32 %v198, %v243
  %472 = vrot.lane.b32.xlu0 %v386, 32
  %v473 = vpop.permute.xlu0 %472
  %v474 = vsel %vm108, %v473, 0
  %476 = vmatpush.msra.mxu0 0.0
  %477 = vmatpush.msra.mxu0 0.0
  %478 = vmatpush.msra.mxu0 0.0
  %479 = vmatpush.msra.mxu0 0.0
  %480 = vmatpush.msra.mxu0 0.0
  %481 = vmatpush.msra.mxu0 0.0
  %482 = vmatpush.msra.mxu0 0.0
  %483 = vmatpush.msra.mxu0 0.0
  %484 = vmatpush.msra.mxu0 0.0
  %485 = vmatpush.msra.mxu0 0.0
  %486 = vmatpush.msra.mxu0 0.0
  %487 = vmatpush.msra.mxu0 0.0
  %488 = vmatpush.msra.mxu0 %v248
  %489 = vmatpush.msra.mxu0 %v247
  %490 = vmatpush.msra.mxu0 %v246
  %491 = vmatpush.msra.mxu0 %v245
  %492 = vmatmul.f32.gmra.mxu0 %v474
  %v493 = vpop.f32.mrf.mxu0
  %v494 = vadd.f32 0.0, %v493
  %495 = vdwg.mxu0
  %v496 = vadd.f32 %v470, %v494
  %v497 = vsub.f32 0.0, %v496
  %v498 = vmul.f32 %v497, 1.442695
  %v499 = vpow.pop %v498
  %v500 = vadd.f32 %v499, 1.0
  %v501 = vrcp.pop %v500
  %v502 = vmul.f32 %v500, %v501
  %v503 = vsub.f32 1.0, %v502
  %v504 = vmul.f32 %v501, %v503
  %v505 = vadd.f32 %v501, %v504
  %vm506 = vweird.f32 %v500
  %vm507 = vweird.f32 %v501
  %vm508 = vmor %vm506, %vm507
  %v509 = vsel %vm508, %v501, %v505
  %v510 = vand.u32 2147483647, %v500
  %vm511 = vcmp.eq.f32.partialorder %v510, 8.507059e+37
  %v512 = vand.u32 %v500, 2147483648
  %v513 = vor.u32 1.1754944e-38, %v512
  %v514 = vsel %vm511, %v513, %v509
  %v515 = vmul.f32 1.0, %v514
  %v516 = vtanh.pop %v496
  %v517 = vmul.f32 %v515, %v380
  %519 = vrot.lane.b32.xlu0 %v516, 64
  %v520 = vpop.permute.xlu0 %519
  %v522 = vmul.f32 %v515, %v520
  %524 = vrot.lane.b32.xlu0 %v522, 32
  %v525 = vpop.permute.xlu0 %524
  %v527 = vadd.f32 %v517, %v525
  %v528 = vtanh.pop %v527
  %530 = vrot.lane.b32.xlu0 %v528, 64
  %v531 = vpop.permute.xlu0 %530
  %v533 = vmul.f32 %v515, %v531
  %534 = vmatpush.msra.mxu0 0.0
  %535 = vmatpush.msra.mxu0 0.0
  %536 = vmatpush.msra.mxu0 0.0
  %537 = vmatpush.msra.mxu0 0.0
  %538 = vmatpush.msra.mxu0 0.0
  %539 = vmatpush.msra.mxu0 0.0
  %540 = vmatpush.msra.mxu0 0.0
  %541 = vmatpush.msra.mxu0 0.0
  %542 = vmatpush.msra.mxu0 0.0
  %543 = vmatpush.msra.mxu0 0.0
  %544 = vmatpush.msra.mxu0 0.0
  %545 = vmatpush.msra.mxu0 0.0
  %546 = vmatpush.msra.mxu0 %v256
  %547 = vmatpush.msra.mxu0 %v255
  %548 = vmatpush.msra.mxu0 %v254
  %549 = vmatpush.msra.mxu0 %v253
  %550 = vmatmul.f32.gmra.mxu0 %v474
  %v551 = vpop.f32.mrf.mxu0
  %v552 = vadd.f32 %v259, %v551
  %553 = vdwg.mxu0
  %v554 = vsel %vm108, %v467, 0
  %556 = vmatpush.msra.mxu0 0.0
  %557 = vmatpush.msra.mxu0 0.0
  %558 = vmatpush.msra.mxu0 0.0
  %559 = vmatpush.msra.mxu0 0.0
  %560 = vmatpush.msra.mxu0 0.0
  %561 = vmatpush.msra.mxu0 0.0
  %562 = vmatpush.msra.mxu0 0.0
  %563 = vmatpush.msra.mxu0 0.0
  %564 = vmatpush.msra.mxu0 0.0
  %565 = vmatpush.msra.mxu0 0.0
  %566 = vmatpush.msra.mxu0 0.0
  %567 = vmatpush.msra.mxu0 0.0
  %568 = vmatpush.msra.mxu0 %v252
  %569 = vmatpush.msra.mxu0 %v251
  %570 = vmatpush.msra.mxu0 %v250
  %571 = vmatpush.msra.mxu0 %v249
  %572 = vmatmul.f32.gmra.mxu0 %v554
  %v573 = vpop.f32.mrf.mxu0
  %v574 = vadd.f32 0.0, %v573
  %575 = vdwg.mxu0
  %v576 = vadd.f32 %v552, %v574
  %v577 = vsub.f32 0.0, %v576
  %v578 = vmul.f32 %v577, 1.442695
  %v579 = vpow.pop %v578
  %v580 = vadd.f32 %v579, 1.0
  %v581 = vrcp.pop %v580
  %v582 = vmul.f32 %v580, %v581
  %v583 = vsub.f32 1.0, %v582
  %v584 = vmul.f32 %v581, %v583
  %v585 = vadd.f32 %v581, %v584
  %vm586 = vweird.f32 %v580
  %vm587 = vweird.f32 %v581
  %vm588 = vmor %vm586, %vm587
  %v589 = vsel %vm588, %v581, %v585
  %v590 = vand.u32 2147483647, %v580
  %vm591 = vcmp.eq.f32.partialorder %v590, 8.507059e+37
  %v592 = vand.u32 %v580, 2147483648
  %v593 = vor.u32 1.1754944e-38, %v592
  %v594 = vsel %vm591, %v593, %v589
  %v595 = vmul.f32 1.0, %v594
  %v596 = vtanh.pop %v576
  %v597 = vmul.f32 %v595, %v458
  %599 = vrot.lane.b32.xlu0 %v596, 64
  %v600 = vpop.permute.xlu0 %599
  %v602 = vmul.f32 %v595, %v600
  %604 = vrot.lane.b32.xlu0 %v602, 32
  %v605 = vpop.permute.xlu0 %604
  %v607 = vadd.f32 %v597, %v605
  %v608 = vtanh.pop %v607
  %610 = vrot.lane.b32.xlu0 %v608, 64
  %v611 = vpop.permute.xlu0 %610
  %v613 = vmul.f32 %v595, %v611
  %615 = vrot.lane.b32.xlu0 %v613, 32
  %v616 = vpop.permute.xlu0 %615
  %618 = vst.msk [vmem:[#allocation2 + $0x8] sm:$0xff] %vm108, %v616
  %v619 = vadd.f32 %v201, %v243
  %621 = vrot.lane.b32.xlu0 %v533, 32
  %v622 = vpop.permute.xlu0 %621
  %v623 = vsel %vm108, %v622, 0
  %625 = vmatpush.msra.mxu0 0.0
  %626 = vmatpush.msra.mxu0 0.0
  %627 = vmatpush.msra.mxu0 0.0
  %628 = vmatpush.msra.mxu0 0.0
  %629 = vmatpush.msra.mxu0 0.0
  %630 = vmatpush.msra.mxu0 0.0
  %631 = vmatpush.msra.mxu0 0.0
  %632 = vmatpush.msra.mxu0 0.0
  %633 = vmatpush.msra.mxu0 0.0
  %634 = vmatpush.msra.mxu0 0.0
  %635 = vmatpush.msra.mxu0 0.0
  %636 = vmatpush.msra.mxu0 0.0
  %637 = vmatpush.msra.mxu0 %v248
  %638 = vmatpush.msra.mxu0 %v247
  %639 = vmatpush.msra.mxu0 %v246
  %640 = vmatpush.msra.mxu0 %v245
  %641 = vmatmul.f32.gmra.mxu0 %v623
  %v642 = vpop.f32.mrf.mxu0
  %v643 = vadd.f32 0.0, %v642
  %644 = vdwg.mxu0
  %v645 = vadd.f32 %v619, %v643
  %v646 = vsub.f32 0.0, %v645
  %v647 = vmul.f32 %v646, 1.442695
  %v648 = vpow.pop %v647
  %v649 = vadd.f32 %v648, 1.0
  %v650 = vrcp.pop %v649
  %v651 = vmul.f32 %v649, %v650
  %v652 = vsub.f32 1.0, %v651
  %v653 = vmul.f32 %v650, %v652
  %v654 = vadd.f32 %v650, %v653
  %vm655 = vweird.f32 %v649
  %vm656 = vweird.f32 %v650
  %vm657 = vmor %vm655, %vm656
  %v658 = vsel %vm657, %v650, %v654
  %v659 = vand.u32 2147483647, %v649
  %vm660 = vcmp.eq.f32.partialorder %v659, 8.507059e+37
  %v661 = vand.u32 %v649, 2147483648
  %v662 = vor.u32 1.1754944e-38, %v661
  %v663 = vsel %vm660, %v662, %v658
  %v664 = vmul.f32 1.0, %v663
  %v665 = vtanh.pop %v645
  %v666 = vmul.f32 %v664, %v527
  %668 = vrot.lane.b32.xlu0 %v665, 64
  %v669 = vpop.permute.xlu0 %668
  %v671 = vmul.f32 %v664, %v669
  %673 = vrot.lane.b32.xlu0 %v671, 32
  %v674 = vpop.permute.xlu0 %673
  %v676 = vadd.f32 %v666, %v674
  %v677 = vtanh.pop %v676
  %679 = vrot.lane.b32.xlu0 %v677, 64
  %v680 = vpop.permute.xlu0 %679
  %v682 = vmul.f32 %v664, %v680
  %683 = vmatpush.msra.mxu0 0.0
  %684 = vmatpush.msra.mxu0 0.0
  %685 = vmatpush.msra.mxu0 0.0
  %686 = vmatpush.msra.mxu0 0.0
  %687 = vmatpush.msra.mxu0 0.0
  %688 = vmatpush.msra.mxu0 0.0
  %689 = vmatpush.msra.mxu0 0.0
  %690 = vmatpush.msra.mxu0 0.0
  %691 = vmatpush.msra.mxu0 0.0
  %692 = vmatpush.msra.mxu0 0.0
  %693 = vmatpush.msra.mxu0 0.0
  %694 = vmatpush.msra.mxu0 0.0
  %695 = vmatpush.msra.mxu0 %v256
  %696 = vmatpush.msra.mxu0 %v255
  %697 = vmatpush.msra.mxu0 %v254
  %698 = vmatpush.msra.mxu0 %v253
  %699 = vmatmul.f32.gmra.mxu0 %v623
  %v700 = vpop.f32.mrf.mxu0
  %v701 = vadd.f32 %v259, %v700
  %702 = vdwg.mxu0
  %v703 = vsel %vm108, %v616, 0
  %705 = vmatpush.msra.mxu0 0.0
  %706 = vmatpush.msra.mxu0 0.0
  %707 = vmatpush.msra.mxu0 0.0
  %708 = vmatpush.msra.mxu0 0.0
  %709 = vmatpush.msra.mxu0 0.0
  %710 = vmatpush.msra.mxu0 0.0
  %711 = vmatpush.msra.mxu0 0.0
  %712 = vmatpush.msra.mxu0 0.0
  %713 = vmatpush.msra.mxu0 0.0
  %714 = vmatpush.msra.mxu0 0.0
  %715 = vmatpush.msra.mxu0 0.0
  %716 = vmatpush.msra.mxu0 0.0
  %717 = vmatpush.msra.mxu0 %v252
  %718 = vmatpush.msra.mxu0 %v251
  %719 = vmatpush.msra.mxu0 %v250
  %720 = vmatpush.msra.mxu0 %v249
  %721 = vmatmul.f32.gmra.mxu0 %v703
  %v722 = vpop.f32.mrf.mxu0
  %v723 = vadd.f32 0.0, %v722
  %724 = vdwg.mxu0
  %v725 = vadd.f32 %v701, %v723
  %v726 = vsub.f32 0.0, %v725
  %v727 = vmul.f32 %v726, 1.442695
  %v728 = vpow.pop %v727
  %v729 = vadd.f32 %v728, 1.0
  %v730 = vrcp.pop %v729
  %v731 = vmul.f32 %v729, %v730
  %v732 = vsub.f32 1.0, %v731
  %v733 = vmul.f32 %v730, %v732
  %v734 = vadd.f32 %v730, %v733
  %vm735 = vweird.f32 %v729
  %vm736 = vweird.f32 %v730
  %vm737 = vmor %vm735, %vm736
  %v738 = vsel %vm737, %v730, %v734
  %v739 = vand.u32 2147483647, %v729
  %vm740 = vcmp.eq.f32.partialorder %v739, 8.507059e+37
  %v741 = vand.u32 %v729, 2147483648
  %v742 = vor.u32 1.1754944e-38, %v741
  %v743 = vsel %vm740, %v742, %v738
  %v744 = vmul.f32 1.0, %v743
  %v745 = vtanh.pop %v725
  %v746 = vmul.f32 %v744, %v607
  %748 = vrot.lane.b32.xlu0 %v745, 64
  %v749 = vpop.permute.xlu0 %748
  %v751 = vmul.f32 %v744, %v749
  %753 = vrot.lane.b32.xlu0 %v751, 32
  %v754 = vpop.permute.xlu0 %753
  %v756 = vadd.f32 %v746, %v754
  %v757 = vtanh.pop %v756
  %759 = vrot.lane.b32.xlu0 %v757, 64
  %v760 = vpop.permute.xlu0 %759
  %v762 = vmul.f32 %v744, %v760
  %764 = vrot.lane.b32.xlu0 %v762, 32
  %v765 = vpop.permute.xlu0 %764
  %767 = vst.msk [vmem:[#allocation2 + $0x10] sm:$0xff] %vm108, %v765
  %v768 = vadd.f32 %v204, %v243
  %770 = vrot.lane.b32.xlu0 %v682, 32
  %v771 = vpop.permute.xlu0 %770
  %v772 = vsel %vm108, %v771, 0
  %774 = vmatpush.msra.mxu0 0.0
  %775 = vmatpush.msra.mxu0 0.0
  %776 = vmatpush.msra.mxu0 0.0
  %777 = vmatpush.msra.mxu0 0.0
  %778 = vmatpush.msra.mxu0 0.0
  %779 = vmatpush.msra.mxu0 0.0
  %780 = vmatpush.msra.mxu0 0.0
  %781 = vmatpush.msra.mxu0 0.0
  %782 = vmatpush.msra.mxu0 0.0
  %783 = vmatpush.msra.mxu0 0.0
  %784 = vmatpush.msra.mxu0 0.0
  %785 = vmatpush.msra.mxu0 0.0
  %786 = vmatpush.msra.mxu0 %v248
  %787 = vmatpush.msra.mxu0 %v247
  %788 = vmatpush.msra.mxu0 %v246
  %789 = vmatpush.msra.mxu0 %v245
  %790 = vmatmul.f32.gmra.mxu0 %v772
  %v791 = vpop.f32.mrf.mxu0
  %v792 = vadd.f32 0.0, %v791
  %793 = vdwg.mxu0
  %v794 = vadd.f32 %v768, %v792
  %v795 = vsub.f32 0.0, %v794
  %v796 = vmul.f32 %v795, 1.442695
  %v797 = vpow.pop %v796
  %v798 = vadd.f32 %v797, 1.0
  %v799 = vrcp.pop %v798
  %v800 = vmul.f32 %v798, %v799
  %v801 = vsub.f32 1.0, %v800
  %v802 = vmul.f32 %v799, %v801
  %v803 = vadd.f32 %v799, %v802
  %vm804 = vweird.f32 %v798
  %vm805 = vweird.f32 %v799
  %vm806 = vmor %vm804, %vm805
  %v807 = vsel %vm806, %v799, %v803
  %v808 = vand.u32 2147483647, %v798
  %vm809 = vcmp.eq.f32.partialorder %v808, 8.507059e+37
  %v810 = vand.u32 %v798, 2147483648
  %v811 = vor.u32 1.1754944e-38, %v810
  %v812 = vsel %vm809, %v811, %v807
  %v813 = vmul.f32 1.0, %v812
  %v814 = vtanh.pop %v794
  %v815 = vmul.f32 %v813, %v676
  %817 = vrot.lane.b32.xlu0 %v814, 64
  %v818 = vpop.permute.xlu0 %817
  %v820 = vmul.f32 %v813, %v818
  %822 = vrot.lane.b32.xlu0 %v820, 32
  %v823 = vpop.permute.xlu0 %822
  %v825 = vadd.f32 %v815, %v823
  %v826 = vtanh.pop %v825
  %828 = vrot.lane.b32.xlu0 %v826, 64
  %v829 = vpop.permute.xlu0 %828
  %v831 = vmul.f32 %v813, %v829
  %832 = vmatpush.msra.mxu0 0.0
  %833 = vmatpush.msra.mxu0 0.0
  %834 = vmatpush.msra.mxu0 0.0
  %835 = vmatpush.msra.mxu0 0.0
  %836 = vmatpush.msra.mxu0 0.0
  %837 = vmatpush.msra.mxu0 0.0
  %838 = vmatpush.msra.mxu0 0.0
  %839 = vmatpush.msra.mxu0 0.0
  %840 = vmatpush.msra.mxu0 0.0
  %841 = vmatpush.msra.mxu0 0.0
  %842 = vmatpush.msra.mxu0 0.0
  %843 = vmatpush.msra.mxu0 0.0
  %844 = vmatpush.msra.mxu0 %v256
  %845 = vmatpush.msra.mxu0 %v255
  %846 = vmatpush.msra.mxu0 %v254
  %847 = vmatpush.msra.mxu0 %v253
  %848 = vmatmul.f32.gmra.mxu0 %v772
  %v849 = vpop.f32.mrf.mxu0
  %v850 = vadd.f32 %v259, %v849
  %851 = vdwg.mxu0
  %v852 = vsel %vm108, %v765, 0
  %854 = vmatpush.msra.mxu0 0.0
  %855 = vmatpush.msra.mxu0 0.0
  %856 = vmatpush.msra.mxu0 0.0
  %857 = vmatpush.msra.mxu0 0.0
  %858 = vmatpush.msra.mxu0 0.0
  %859 = vmatpush.msra.mxu0 0.0
  %860 = vmatpush.msra.mxu0 0.0
  %861 = vmatpush.msra.mxu0 0.0
  %862 = vmatpush.msra.mxu0 0.0
  %863 = vmatpush.msra.mxu0 0.0
  %864 = vmatpush.msra.mxu0 0.0
  %865 = vmatpush.msra.mxu0 0.0
  %866 = vmatpush.msra.mxu0 %v252
  %867 = vmatpush.msra.mxu0 %v251
  %868 = vmatpush.msra.mxu0 %v250
  %869 = vmatpush.msra.mxu0 %v249
  %870 = vmatmul.f32.gmra.mxu0 %v852
  %v871 = vpop.f32.mrf.mxu0
  %v872 = vadd.f32 0.0, %v871
  %873 = vdwg.mxu0
  %v874 = vadd.f32 %v850, %v872
  %v875 = vsub.f32 0.0, %v874
  %v876 = vmul.f32 %v875, 1.442695
  %v877 = vpow.pop %v876
  %v878 = vadd.f32 %v877, 1.0
  %v879 = vrcp.pop %v878
  %v880 = vmul.f32 %v878, %v879
  %v881 = vsub.f32 1.0, %v880
  %v882 = vmul.f32 %v879, %v881
  %v883 = vadd.f32 %v879, %v882
  %vm884 = vweird.f32 %v878
  %vm885 = vweird.f32 %v879
  %vm886 = vmor %vm884, %vm885
  %v887 = vsel %vm886, %v879, %v883
  %v888 = vand.u32 2147483647, %v878
  %vm889 = vcmp.eq.f32.partialorder %v888, 8.507059e+37
  %v890 = vand.u32 %v878, 2147483648
  %v891 = vor.u32 1.1754944e-38, %v890
  %v892 = vsel %vm889, %v891, %v887
  %v893 = vmul.f32 1.0, %v892
  %v894 = vtanh.pop %v874
  %v895 = vmul.f32 %v893, %v756
  %897 = vrot.lane.b32.xlu0 %v894, 64
  %v898 = vpop.permute.xlu0 %897
  %v900 = vmul.f32 %v893, %v898
  %902 = vrot.lane.b32.xlu0 %v900, 32
  %v903 = vpop.permute.xlu0 %902
  %v905 = vadd.f32 %v895, %v903
  %v906 = vtanh.pop %v905
  %908 = vrot.lane.b32.xlu0 %v906, 64
  %v909 = vpop.permute.xlu0 %908
  %v911 = vmul.f32 %v893, %v909
  %913 = vrot.lane.b32.xlu0 %v911, 32
  %v914 = vpop.permute.xlu0 %913
  %916 = vst.msk [vmem:[#allocation2 + $0x18] sm:$0xff] %vm108, %v914
  %v917 = vadd.f32 %v207, %v243
  %919 = vrot.lane.b32.xlu0 %v831, 32
  %v920 = vpop.permute.xlu0 %919
  %v921 = vsel %vm108, %v920, 0
  %923 = vmatpush.msra.mxu0 0.0
  %924 = vmatpush.msra.mxu0 0.0
  %925 = vmatpush.msra.mxu0 0.0
  %926 = vmatpush.msra.mxu0 0.0
  %927 = vmatpush.msra.mxu0 0.0
  %928 = vmatpush.msra.mxu0 0.0
  %929 = vmatpush.msra.mxu0 0.0
  %930 = vmatpush.msra.mxu0 0.0
  %931 = vmatpush.msra.mxu0 0.0
  %932 = vmatpush.msra.mxu0 0.0
  %933 = vmatpush.msra.mxu0 0.0
  %934 = vmatpush.msra.mxu0 0.0
  %935 = vmatpush.msra.mxu0 %v248
  %936 = vmatpush.msra.mxu0 %v247
  %937 = vmatpush.msra.mxu0 %v246
  %938 = vmatpush.msra.mxu0 %v245
  %939 = vmatmul.f32.gmra.mxu0 %v921
  %v940 = vpop.f32.mrf.mxu0
  %v941 = vadd.f32 0.0, %v940
  %942 = vdwg.mxu0
  %v943 = vadd.f32 %v917, %v941
  %v944 = vsub.f32 0.0, %v943
  %v945 = vmul.f32 %v944, 1.442695
  %v946 = vpow.pop %v945
  %v947 = vadd.f32 %v946, 1.0
  %v948 = vrcp.pop %v947
  %v949 = vmul.f32 %v947, %v948
  %v950 = vsub.f32 1.0, %v949
  %v951 = vmul.f32 %v948, %v950
  %v952 = vadd.f32 %v948, %v951
  %vm953 = vweird.f32 %v947
  %vm954 = vweird.f32 %v948
  %vm955 = vmor %vm953, %vm954
  %v956 = vsel %vm955, %v948, %v952
  %v957 = vand.u32 2147483647, %v947
  %vm958 = vcmp.eq.f32.partialorder %v957, 8.507059e+37
  %v959 = vand.u32 %v947, 2147483648
  %v960 = vor.u32 1.1754944e-38, %v959
  %v961 = vsel %vm958, %v960, %v956
  %v962 = vmul.f32 1.0, %v961
  %v963 = vtanh.pop %v943
  %v964 = vmul.f32 %v962, %v825
  %966 = vrot.lane.b32.xlu0 %v963, 64
  %v967 = vpop.permute.xlu0 %966
  %v969 = vmul.f32 %v962, %v967
  %971 = vrot.lane.b32.xlu0 %v969, 32
  %v972 = vpop.permute.xlu0 %971
  %v974 = vadd.f32 %v964, %v972
  %v975 = vtanh.pop %v974
  %977 = vrot.lane.b32.xlu0 %v975, 64
  %v978 = vpop.permute.xlu0 %977
  %v980 = vmul.f32 %v962, %v978
  %981 = vmatpush.msra.mxu0 0.0
  %982 = vmatpush.msra.mxu0 0.0
  %983 = vmatpush.msra.mxu0 0.0
  %984 = vmatpush.msra.mxu0 0.0
  %985 = vmatpush.msra.mxu0 0.0
  %986 = vmatpush.msra.mxu0 0.0
  %987 = vmatpush.msra.mxu0 0.0
  %988 = vmatpush.msra.mxu0 0.0
  %989 = vmatpush.msra.mxu0 0.0
  %990 = vmatpush.msra.mxu0 0.0
  %991 = vmatpush.msra.mxu0 0.0
  %992 = vmatpush.msra.mxu0 0.0
  %993 = vmatpush.msra.mxu0 %v256
  %994 = vmatpush.msra.mxu0 %v255
  %995 = vmatpush.msra.mxu0 %v254
  %996 = vmatpush.msra.mxu0 %v253
  %997 = vmatmul.f32.gmra.mxu0 %v921
  %v998 = vpop.f32.mrf.mxu0
  %v999 = vadd.f32 %v259, %v998
  %1000 = vdwg.mxu0
  %v1001 = vsel %vm108, %v914, 0
  %1003 = vmatpush.msra.mxu0 0.0
  %1004 = vmatpush.msra.mxu0 0.0
  %1005 = vmatpush.msra.mxu0 0.0
  %1006 = vmatpush.msra.mxu0 0.0
  %1007 = vmatpush.msra.mxu0 0.0
  %1008 = vmatpush.msra.mxu0 0.0
  %1009 = vmatpush.msra.mxu0 0.0
  %1010 = vmatpush.msra.mxu0 0.0
  %1011 = vmatpush.msra.mxu0 0.0
  %1012 = vmatpush.msra.mxu0 0.0
  %1013 = vmatpush.msra.mxu0 0.0
  %1014 = vmatpush.msra.mxu0 0.0
  %1015 = vmatpush.msra.mxu0 %v252
  %1016 = vmatpush.msra.mxu0 %v251
  %1017 = vmatpush.msra.mxu0 %v250
  %1018 = vmatpush.msra.mxu0 %v249
  %1019 = vmatmul.f32.gmra.mxu0 %v1001
  %v1020 = vpop.f32.mrf.mxu0
  %v1021 = vadd.f32 0.0, %v1020
  %1022 = vdwg.mxu0
  %v1023 = vadd.f32 %v999, %v1021
  %v1024 = vsub.f32 0.0, %v1023
  %v1025 = vmul.f32 %v1024, 1.442695
  %v1026 = vpow.pop %v1025
  %v1027 = vadd.f32 %v1026, 1.0
  %v1028 = vrcp.pop %v1027
  %v1029 = vmul.f32 %v1027, %v1028
  %v1030 = vsub.f32 1.0, %v1029
  %v1031 = vmul.f32 %v1028, %v1030
  %v1032 = vadd.f32 %v1028, %v1031
  %vm1033 = vweird.f32 %v1027
  %vm1034 = vweird.f32 %v1028
  %vm1035 = vmor %vm1033, %vm1034
  %v1036 = vsel %vm1035, %v1028, %v1032
  %v1037 = vand.u32 2147483647, %v1027
  %vm1038 = vcmp.eq.f32.partialorder %v1037, 8.507059e+37
  %v1039 = vand.u32 %v1027, 2147483648
  %v1040 = vor.u32 1.1754944e-38, %v1039
  %v1041 = vsel %vm1038, %v1040, %v1036
  %v1042 = vmul.f32 1.0, %v1041
  %v1043 = vtanh.pop %v1023
  %v1044 = vmul.f32 %v1042, %v905
  %1046 = vrot.lane.b32.xlu0 %v1043, 64
  %v1047 = vpop.permute.xlu0 %1046
  %v1049 = vmul.f32 %v1042, %v1047
  %1051 = vrot.lane.b32.xlu0 %v1049, 32
  %v1052 = vpop.permute.xlu0 %1051
  %v1054 = vadd.f32 %v1044, %v1052
  %v1055 = vtanh.pop %v1054
  %1057 = vrot.lane.b32.xlu0 %v1055, 64
  %v1058 = vpop.permute.xlu0 %1057
  %v1060 = vmul.f32 %v1042, %v1058
  %1062 = vrot.lane.b32.xlu0 %v1060, 32
  %v1063 = vpop.permute.xlu0 %1062
  %1065 = vst.msk [vmem:[#allocation2 + $0x20] sm:$0xff] %vm108, %v1063
  %v1066 = vadd.f32 %v210, %v243
  %1068 = vrot.lane.b32.xlu0 %v980, 32
  %v1069 = vpop.permute.xlu0 %1068
  %v1070 = vsel %vm108, %v1069, 0
  %1072 = vmatpush.msra.mxu0 0.0
  %1073 = vmatpush.msra.mxu0 0.0
  %1074 = vmatpush.msra.mxu0 0.0
  %1075 = vmatpush.msra.mxu0 0.0
  %1076 = vmatpush.msra.mxu0 0.0
  %1077 = vmatpush.msra.mxu0 0.0
  %1078 = vmatpush.msra.mxu0 0.0
  %1079 = vmatpush.msra.mxu0 0.0
  %1080 = vmatpush.msra.mxu0 0.0
  %1081 = vmatpush.msra.mxu0 0.0
  %1082 = vmatpush.msra.mxu0 0.0
  %1083 = vmatpush.msra.mxu0 0.0
  %1084 = vmatpush.msra.mxu0 %v248
  %1085 = vmatpush.msra.mxu0 %v247
  %1086 = vmatpush.msra.mxu0 %v246
  %1087 = vmatpush.msra.mxu0 %v245
  %1088 = vmatmul.f32.gmra.mxu0 %v1070
  %v1089 = vpop.f32.mrf.mxu0
  %v1090 = vadd.f32 0.0, %v1089
  %1091 = vdwg.mxu0
  %v1092 = vadd.f32 %v1066, %v1090
  %v1093 = vsub.f32 0.0, %v1092
  %v1094 = vmul.f32 %v1093, 1.442695
  %v1095 = vpow.pop %v1094
  %v1096 = vadd.f32 %v1095, 1.0
  %v1097 = vrcp.pop %v1096
  %v1098 = vmul.f32 %v1096, %v1097
  %v1099 = vsub.f32 1.0, %v1098
  %v1100 = vmul.f32 %v1097, %v1099
  %v1101 = vadd.f32 %v1097, %v1100
  %vm1102 = vweird.f32 %v1096
  %vm1103 = vweird.f32 %v1097
  %vm1104 = vmor %vm1102, %vm1103
  %v1105 = vsel %vm1104, %v1097, %v1101
  %v1106 = vand.u32 2147483647, %v1096
  %vm1107 = vcmp.eq.f32.partialorder %v1106, 8.507059e+37
  %v1108 = vand.u32 %v1096, 2147483648
  %v1109 = vor.u32 1.1754944e-38, %v1108
  %v1110 = vsel %vm1107, %v1109, %v1105
  %v1111 = vmul.f32 1.0, %v1110
  %v1112 = vtanh.pop %v1092
  %v1113 = vmul.f32 %v1111, %v974
  %1115 = vrot.lane.b32.xlu0 %v1112, 64
  %v1116 = vpop.permute.xlu0 %1115
  %v1118 = vmul.f32 %v1111, %v1116
  %1120 = vrot.lane.b32.xlu0 %v1118, 32
  %v1121 = vpop.permute.xlu0 %1120
  %v1123 = vadd.f32 %v1113, %v1121
  %v1124 = vtanh.pop %v1123
  %1126 = vrot.lane.b32.xlu0 %v1124, 64
  %v1127 = vpop.permute.xlu0 %1126
  %v1129 = vmul.f32 %v1111, %v1127
  %1130 = vmatpush.msra.mxu0 0.0
  %1131 = vmatpush.msra.mxu0 0.0
  %1132 = vmatpush.msra.mxu0 0.0
  %1133 = vmatpush.msra.mxu0 0.0
  %1134 = vmatpush.msra.mxu0 0.0
  %1135 = vmatpush.msra.mxu0 0.0
  %1136 = vmatpush.msra.mxu0 0.0
  %1137 = vmatpush.msra.mxu0 0.0
  %1138 = vmatpush.msra.mxu0 0.0
  %1139 = vmatpush.msra.mxu0 0.0
  %1140 = vmatpush.msra.mxu0 0.0
  %1141 = vmatpush.msra.mxu0 0.0
  %1142 = vmatpush.msra.mxu0 %v256
  %1143 = vmatpush.msra.mxu0 %v255
  %1144 = vmatpush.msra.mxu0 %v254
  %1145 = vmatpush.msra.mxu0 %v253
  %1146 = vmatmul.f32.gmra.mxu0 %v1070
  %v1147 = vpop.f32.mrf.mxu0
  %v1148 = vadd.f32 %v259, %v1147
  %1149 = vdwg.mxu0
  %v1150 = vsel %vm108, %v1063, 0
  %1152 = vmatpush.msra.mxu0 0.0
  %1153 = vmatpush.msra.mxu0 0.0
  %1154 = vmatpush.msra.mxu0 0.0
  %1155 = vmatpush.msra.mxu0 0.0
  %1156 = vmatpush.msra.mxu0 0.0
  %1157 = vmatpush.msra.mxu0 0.0
  %1158 = vmatpush.msra.mxu0 0.0
  %1159 = vmatpush.msra.mxu0 0.0
  %1160 = vmatpush.msra.mxu0 0.0
  %1161 = vmatpush.msra.mxu0 0.0
  %1162 = vmatpush.msra.mxu0 0.0
  %1163 = vmatpush.msra.mxu0 0.0
  %1164 = vmatpush.msra.mxu0 %v252
  %1165 = vmatpush.msra.mxu0 %v251
  %1166 = vmatpush.msra.mxu0 %v250
  %1167 = vmatpush.msra.mxu0 %v249
  %1168 = vmatmul.f32.gmra.mxu0 %v1150
  %v1169 = vpop.f32.mrf.mxu0
  %v1170 = vadd.f32 0.0, %v1169
  %1171 = vdwg.mxu0
  %v1172 = vadd.f32 %v1148, %v1170
  %v1173 = vsub.f32 0.0, %v1172
  %v1174 = vmul.f32 %v1173, 1.442695
  %v1175 = vpow.pop %v1174
  %v1176 = vadd.f32 %v1175, 1.0
  %v1177 = vrcp.pop %v1176
  %v1178 = vmul.f32 %v1176, %v1177
  %v1179 = vsub.f32 1.0, %v1178
  %v1180 = vmul.f32 %v1177, %v1179
  %v1181 = vadd.f32 %v1177, %v1180
  %vm1182 = vweird.f32 %v1176
  %vm1183 = vweird.f32 %v1177
  %vm1184 = vmor %vm1182, %vm1183
  %v1185 = vsel %vm1184, %v1177, %v1181
  %v1186 = vand.u32 2147483647, %v1176
  %vm1187 = vcmp.eq.f32.partialorder %v1186, 8.507059e+37
  %v1188 = vand.u32 %v1176, 2147483648
  %v1189 = vor.u32 1.1754944e-38, %v1188
  %v1190 = vsel %vm1187, %v1189, %v1185
  %v1191 = vmul.f32 1.0, %v1190
  %v1192 = vtanh.pop %v1172
  %v1193 = vmul.f32 %v1191, %v1054
  %1195 = vrot.lane.b32.xlu0 %v1192, 64
  %v1196 = vpop.permute.xlu0 %1195
  %v1198 = vmul.f32 %v1191, %v1196
  %1200 = vrot.lane.b32.xlu0 %v1198, 32
  %v1201 = vpop.permute.xlu0 %1200
  %v1203 = vadd.f32 %v1193, %v1201
  %v1204 = vtanh.pop %v1203
  %1206 = vrot.lane.b32.xlu0 %v1204, 64
  %v1207 = vpop.permute.xlu0 %1206
  %v1209 = vmul.f32 %v1191, %v1207
  %1211 = vrot.lane.b32.xlu0 %v1209, 32
  %v1212 = vpop.permute.xlu0 %1211
  %1214 = vst.msk [vmem:[#allocation2 + $0x28] sm:$0xff] %vm108, %v1212
  %v1215 = vadd.f32 %v213, %v243
  %1217 = vrot.lane.b32.xlu0 %v1129, 32
  %v1218 = vpop.permute.xlu0 %1217
  %v1219 = vsel %vm108, %v1218, 0
  %1221 = vmatpush.msra.mxu0 0.0
  %1222 = vmatpush.msra.mxu0 0.0
  %1223 = vmatpush.msra.mxu0 0.0
  %1224 = vmatpush.msra.mxu0 0.0
  %1225 = vmatpush.msra.mxu0 0.0
  %1226 = vmatpush.msra.mxu0 0.0
  %1227 = vmatpush.msra.mxu0 0.0
  %1228 = vmatpush.msra.mxu0 0.0
  %1229 = vmatpush.msra.mxu0 0.0
  %1230 = vmatpush.msra.mxu0 0.0
  %1231 = vmatpush.msra.mxu0 0.0
  %1232 = vmatpush.msra.mxu0 0.0
  %1233 = vmatpush.msra.mxu0 %v248
  %1234 = vmatpush.msra.mxu0 %v247
  %1235 = vmatpush.msra.mxu0 %v246
  %1236 = vmatpush.msra.mxu0 %v245
  %1237 = vmatmul.f32.gmra.mxu0 %v1219
  %v1238 = vpop.f32.mrf.mxu0
  %v1239 = vadd.f32 0.0, %v1238
  %1240 = vdwg.mxu0
  %v1241 = vadd.f32 %v1215, %v1239
  %v1242 = vsub.f32 0.0, %v1241
  %v1243 = vmul.f32 %v1242, 1.442695
  %v1244 = vpow.pop %v1243
  %v1245 = vadd.f32 %v1244, 1.0
  %v1246 = vrcp.pop %v1245
  %v1247 = vmul.f32 %v1245, %v1246
  %v1248 = vsub.f32 1.0, %v1247
  %v1249 = vmul.f32 %v1246, %v1248
  %v1250 = vadd.f32 %v1246, %v1249
  %vm1251 = vweird.f32 %v1245
  %vm1252 = vweird.f32 %v1246
  %vm1253 = vmor %vm1251, %vm1252
  %v1254 = vsel %vm1253, %v1246, %v1250
  %v1255 = vand.u32 2147483647, %v1245
  %vm1256 = vcmp.eq.f32.partialorder %v1255, 8.507059e+37
  %v1257 = vand.u32 %v1245, 2147483648
  %v1258 = vor.u32 1.1754944e-38, %v1257
  %v1259 = vsel %vm1256, %v1258, %v1254
  %v1260 = vmul.f32 1.0, %v1259
  %v1261 = vtanh.pop %v1241
  %v1262 = vmul.f32 %v1260, %v1123
  %1264 = vrot.lane.b32.xlu0 %v1261, 64
  %v1265 = vpop.permute.xlu0 %1264
  %v1267 = vmul.f32 %v1260, %v1265
  %1269 = vrot.lane.b32.xlu0 %v1267, 32
  %v1270 = vpop.permute.xlu0 %1269
  %v1272 = vadd.f32 %v1262, %v1270
  %v1273 = vtanh.pop %v1272
  %1275 = vrot.lane.b32.xlu0 %v1273, 64
  %v1276 = vpop.permute.xlu0 %1275
  %v1278 = vmul.f32 %v1260, %v1276
  %1279 = vmatpush.msra.mxu0 0.0
  %1280 = vmatpush.msra.mxu0 0.0
  %1281 = vmatpush.msra.mxu0 0.0
  %1282 = vmatpush.msra.mxu0 0.0
  %1283 = vmatpush.msra.mxu0 0.0
  %1284 = vmatpush.msra.mxu0 0.0
  %1285 = vmatpush.msra.mxu0 0.0
  %1286 = vmatpush.msra.mxu0 0.0
  %1287 = vmatpush.msra.mxu0 0.0
  %1288 = vmatpush.msra.mxu0 0.0
  %1289 = vmatpush.msra.mxu0 0.0
  %1290 = vmatpush.msra.mxu0 0.0
  %1291 = vmatpush.msra.mxu0 %v256
  %1292 = vmatpush.msra.mxu0 %v255
  %1293 = vmatpush.msra.mxu0 %v254
  %1294 = vmatpush.msra.mxu0 %v253
  %1295 = vmatmul.f32.gmra.mxu0 %v1219
  %v1296 = vpop.f32.mrf.mxu0
  %v1297 = vadd.f32 %v259, %v1296
  %1298 = vdwg.mxu0
  %v1299 = vsel %vm108, %v1212, 0
  %1301 = vmatpush.msra.mxu0 0.0
  %1302 = vmatpush.msra.mxu0 0.0
  %1303 = vmatpush.msra.mxu0 0.0
  %1304 = vmatpush.msra.mxu0 0.0
  %1305 = vmatpush.msra.mxu0 0.0
  %1306 = vmatpush.msra.mxu0 0.0
  %1307 = vmatpush.msra.mxu0 0.0
  %1308 = vmatpush.msra.mxu0 0.0
  %1309 = vmatpush.msra.mxu0 0.0
  %1310 = vmatpush.msra.mxu0 0.0
  %1311 = vmatpush.msra.mxu0 0.0
  %1312 = vmatpush.msra.mxu0 0.0
  %1313 = vmatpush.msra.mxu0 %v252
  %1314 = vmatpush.msra.mxu0 %v251
  %1315 = vmatpush.msra.mxu0 %v250
  %1316 = vmatpush.msra.mxu0 %v249
  %1317 = vmatmul.f32.gmra.mxu0 %v1299
  %v1318 = vpop.f32.mrf.mxu0
  %v1319 = vadd.f32 0.0, %v1318
  %1320 = vdwg.mxu0
  %v1321 = vadd.f32 %v1297, %v1319
  %v1322 = vsub.f32 0.0, %v1321
  %v1323 = vmul.f32 %v1322, 1.442695
  %v1324 = vpow.pop %v1323
  %v1325 = vadd.f32 %v1324, 1.0
  %v1326 = vrcp.pop %v1325
  %v1327 = vmul.f32 %v1325, %v1326
  %v1328 = vsub.f32 1.0, %v1327
  %v1329 = vmul.f32 %v1326, %v1328
  %v1330 = vadd.f32 %v1326, %v1329
  %vm1331 = vweird.f32 %v1325
  %vm1332 = vweird.f32 %v1326
  %vm1333 = vmor %vm1331, %vm1332
  %v1334 = vsel %vm1333, %v1326, %v1330
  %v1335 = vand.u32 2147483647, %v1325
  %vm1336 = vcmp.eq.f32.partialorder %v1335, 8.507059e+37
  %v1337 = vand.u32 %v1325, 2147483648
  %v1338 = vor.u32 1.1754944e-38, %v1337
  %v1339 = vsel %vm1336, %v1338, %v1334
  %v1340 = vmul.f32 1.0, %v1339
  %v1341 = vtanh.pop %v1321
  %v1342 = vmul.f32 %v1340, %v1203
  %1344 = vrot.lane.b32.xlu0 %v1341, 64
  %v1345 = vpop.permute.xlu0 %1344
  %v1347 = vmul.f32 %v1340, %v1345
  %1349 = vrot.lane.b32.xlu0 %v1347, 32
  %v1350 = vpop.permute.xlu0 %1349
  %v1352 = vadd.f32 %v1342, %v1350
  %v1353 = vtanh.pop %v1352
  %1355 = vrot.lane.b32.xlu0 %v1353, 64
  %v1356 = vpop.permute.xlu0 %1355
  %v1358 = vmul.f32 %v1340, %v1356
  %1360 = vrot.lane.b32.xlu0 %v1358, 32
  %v1361 = vpop.permute.xlu0 %1360
  %1363 = vst.msk [vmem:[#allocation2 + $0x30] sm:$0xff] %vm108, %v1361
  %1365 = vrot.lane.b32.xlu0 %v1278, 32
  %v1366 = vpop.permute.xlu0 %1365
  %v1367 = vsel %vm108, %v1366, 0
  %1369 = vmatpush.msra.mxu0 0.0
  %1370 = vmatpush.msra.mxu0 0.0
  %1371 = vmatpush.msra.mxu0 0.0
  %1372 = vmatpush.msra.mxu0 0.0
  %1373 = vmatpush.msra.mxu0 0.0
  %1374 = vmatpush.msra.mxu0 0.0
  %1375 = vmatpush.msra.mxu0 0.0
  %1376 = vmatpush.msra.mxu0 0.0
  %1377 = vmatpush.msra.mxu0 0.0
  %1378 = vmatpush.msra.mxu0 0.0
  %1379 = vmatpush.msra.mxu0 0.0
  %1380 = vmatpush.msra.mxu0 0.0
  %1381 = vmatpush.msra.mxu0 %v256
  %1382 = vmatpush.msra.mxu0 %v255
  %1383 = vmatpush.msra.mxu0 %v254
  %1384 = vmatpush.msra.mxu0 %v253
  %1385 = vmatmul.f32.gmra.mxu0 %v1367
  %v1386 = vpop.f32.mrf.mxu0
  %v1387 = vadd.f32 %v259, %v1386
  %1388 = vdwg.mxu0
  %v1389 = vsel %vm108, %v1361, 0
  %1391 = vmatpush.msra.mxu0 0.0
  %1392 = vmatpush.msra.mxu0 0.0
  %1393 = vmatpush.msra.mxu0 0.0
  %1394 = vmatpush.msra.mxu0 0.0
  %1395 = vmatpush.msra.mxu0 0.0
  %1396 = vmatpush.msra.mxu0 0.0
  %1397 = vmatpush.msra.mxu0 0.0
  %1398 = vmatpush.msra.mxu0 0.0
  %1399 = vmatpush.msra.mxu0 0.0
  %1400 = vmatpush.msra.mxu0 0.0
  %1401 = vmatpush.msra.mxu0 0.0
  %1402 = vmatpush.msra.mxu0 0.0
  %1403 = vmatpush.msra.mxu0 %v252
  %1404 = vmatpush.msra.mxu0 %v251
  %1405 = vmatpush.msra.mxu0 %v250
  %1406 = vmatpush.msra.mxu0 %v249
  %1407 = vmatmul.f32.gmra.mxu0 %v1389
  %v1408 = vpop.f32.mrf.mxu0
  %v1409 = vadd.f32 0.0, %v1408
  %1410 = vdwg.mxu0
  %v1411 = vadd.f32 %v1387, %v1409
  %v1412 = vsub.f32 0.0, %v1411
  %v1413 = vmul.f32 %v1412, 1.442695
  %v1414 = vpow.pop %v1413
  %v1415 = vadd.f32 %v1414, 1.0
  %v1416 = vrcp.pop %v1415
  %v1417 = vmul.f32 %v1415, %v1416
  %v1418 = vsub.f32 1.0, %v1417
  %v1419 = vmul.f32 %v1416, %v1418
  %v1420 = vadd.f32 %v1416, %v1419
  %vm1421 = vweird.f32 %v1415
  %vm1422 = vweird.f32 %v1416
  %vm1423 = vmor %vm1421, %vm1422
  %v1424 = vsel %vm1423, %v1416, %v1420
  %v1425 = vand.u32 2147483647, %v1415
  %vm1426 = vcmp.eq.f32.partialorder %v1425, 8.507059e+37
  %v1427 = vand.u32 %v1415, 2147483648
  %v1428 = vor.u32 1.1754944e-38, %v1427
  %v1429 = vsel %vm1426, %v1428, %v1424
  %v1430 = vmul.f32 1.0, %v1429
  %v1431 = vtanh.pop %v1411
  %v1432 = vmul.f32 %v1430, %v1352
  %1434 = vrot.lane.b32.xlu0 %v1431, 64
  %v1435 = vpop.permute.xlu0 %1434
  %v1437 = vmul.f32 %v1430, %v1435
  %1439 = vrot.lane.b32.xlu0 %v1437, 32
  %v1440 = vpop.permute.xlu0 %1439
  %v1442 = vadd.f32 %v1432, %v1440
  %v1443 = vtanh.pop %v1442
  %1445 = vrot.lane.b32.xlu0 %v1443, 64
  %v1446 = vpop.permute.xlu0 %1445
  %v1448 = vmul.f32 %v1430, %v1446
  %1450 = vrot.lane.b32.xlu0 %v1448, 32
  %v1451 = vpop.permute.xlu0 %1450
  %1453 = vst.msk [vmem:[#allocation2 + $0x38] sm:$0xff] %vm108, %v1451
  %1455 = vst.msk [vmem:[%s15] sm:$0xff] %vm108, %v1366
  %1457 = vrot.lane.b32.xlu0 %v1272, 96
  %v1458 = vpop.permute.xlu0 %1457
  %1460 = vst.msk [vmem:[%s16] sm:$0xff] %vm108, %v1458
  %s1461 = scalar_lea.vmem %s15, 8
  %1462 = vst.msk [vmem:[%s1461] sm:$0xff] %vm108, %v1451
  %1464 = vrot.lane.b32.xlu0 %v1442, 96
  %v1465 = vpop.permute.xlu0 %1464
  %s1467 = scalar_lea.vmem %s16, 8
  %1468 = vst.msk [vmem:[%s1467] sm:$0xff] %vm108, %v1465
  %v1469 = vld [vmem:[#allocation2] sm:$0xff]
  %v1470 = vld [vmem:[#allocation2 + $0x8] sm:$0xff]
  %v1471 = vld [vmem:[#allocation2 + $0x10] sm:$0xff]
  %v1472 = vld [vmem:[#allocation2 + $0x18] sm:$0xff]
  %v1473 = vld [vmem:[#allocation2 + $0x20] sm:$0xff]
  %v1474 = vld [vmem:[#allocation2 + $0x28] sm:$0xff]
  %v1475 = vld [vmem:[#allocation2 + $0x30] sm:$0xff]
  %v1476 = vld [vmem:[#allocation2 + $0x38] sm:$0xff]
  %v1477 = vld [vmem:[%s10] sm:$0xff]
  %v1478 = vld [vmem:[%s10 + $0x8] sm:$0xff]
  %v1479 = vld [vmem:[%s10 + $0x10] sm:$0xff]
  %v1480 = vld [vmem:[%s10 + $0x18] sm:$0xff]
  %v1481 = vld [vmem:[%s11] sm:$0x1]
  %v1483 = vperm.slane %v1481, 0
  %v1486 = vsel %vm108, %v1469, 0
  %v1489 = vsel %vm108, %v1470, 0
  %v1492 = vsel %vm108, %v1471, 0
  %v1495 = vsel %vm108, %v1472, 0
  %v1498 = vsel %vm108, %v1473, 0
  %v1501 = vsel %vm108, %v1474, 0
  %v1504 = vsel %vm108, %v1475, 0
  %v1507 = vsel %vm108, %v1476, 0
  %1509 = vmatpush.msra.mxu0 0.0
  %1510 = vmatpush.msra.mxu0 0.0
  %1511 = vmatpush.msra.mxu0 0.0
  %1512 = vmatpush.msra.mxu0 0.0
  %1513 = vmatpush.msra.mxu0 0.0
  %1514 = vmatpush.msra.mxu0 0.0
  %1515 = vmatpush.msra.mxu0 0.0
  %1516 = vmatpush.msra.mxu0 0.0
  %1517 = vmatpush.msra.mxu0 0.0
  %1518 = vmatpush.msra.mxu0 0.0
  %1519 = vmatpush.msra.mxu0 0.0
  %1520 = vmatpush.msra.mxu0 0.0
  %1521 = vmatpush.msra.mxu0 %v1480
  %1522 = vmatpush.msra.mxu0 %v1479
  %1523 = vmatpush.msra.mxu0 %v1478
  %1524 = vmatpush.msra.mxu0 %v1477
  %1525 = vmatmul.f32.gmra.mxu0 %v1486
  %v1526 = vpop.f32.mrf.mxu0
  %v1527 = vadd.f32 %v1483, %v1526
  %1528 = vmatmul.f32.gmra.mxu0 %v1489
  %v1529 = vpop.f32.mrf.mxu0
  %v1530 = vadd.f32 %v1483, %v1529
  %1531 = vmatmul.f32.gmra.mxu0 %v1492
  %v1532 = vpop.f32.mrf.mxu0
  %v1533 = vadd.f32 %v1483, %v1532
  %1534 = vmatmul.f32.gmra.mxu0 %v1495
  %v1535 = vpop.f32.mrf.mxu0
  %v1536 = vadd.f32 %v1483, %v1535
  %1537 = vmatmul.f32.gmra.mxu0 %v1498
  %v1538 = vpop.f32.mrf.mxu0
  %v1539 = vadd.f32 %v1483, %v1538
  %1540 = vmatmul.f32.gmra.mxu0 %v1501
  %v1541 = vpop.f32.mrf.mxu0
  %v1542 = vadd.f32 %v1483, %v1541
  %1543 = vmatmul.f32.gmra.mxu0 %v1504
  %v1544 = vpop.f32.mrf.mxu0
  %v1545 = vadd.f32 %v1483, %v1544
  %1546 = vmatmul.f32.gmra.mxu0 %v1507
  %v1547 = vpop.f32.mrf.mxu0
  %v1548 = vadd.f32 %v1483, %v1547
  %1549 = vdwg.mxu0
  %v1550 = vtanh.pop %v1527
  %v1551 = vtanh.pop %v1530
  %v1552 = vtanh.pop %v1533
  %v1553 = vtanh.pop %v1536
  %v1554 = vtanh.pop %v1539
  %v1555 = vtanh.pop %v1542
  %v1556 = vtanh.pop %v1545
  %v1557 = vtanh.pop %v1548
  %v1558 = vld [vmem:[%s12] sm:$0xff]
  %v1559 = vld [vmem:[%s12 + $0x8] sm:$0xff]
  %v1560 = vld [vmem:[%s13] sm:$0x1]
  %v1562 = vperm.slane %v1560, 0
  %vm1564 = vcmask 130048
  %v1566 = vsel %vm1564, %v1550, 0
  %v1569 = vsel %vm1564, %v1551, 0
  %v1572 = vsel %vm1564, %v1552, 0
  %v1575 = vsel %vm1564, %v1553, 0
  %v1578 = vsel %vm1564, %v1554, 0
  %v1581 = vsel %vm1564, %v1555, 0
  %v1584 = vsel %vm1564, %v1556, 0
  %v1587 = vsel %vm1564, %v1557, 0
  %1589 = vmatpush.msra.mxu0 0.0
  %1590 = vmatpush.msra.mxu0 0.0
  %1591 = vmatpush.msra.mxu0 0.0
  %1592 = vmatpush.msra.mxu0 0.0
  %1593 = vmatpush.msra.mxu0 0.0
  %1594 = vmatpush.msra.mxu0 0.0
  %1595 = vmatpush.msra.mxu0 0.0
  %1596 = vmatpush.msra.mxu0 0.0
  %1597 = vmatpush.msra.mxu0 0.0
  %1598 = vmatpush.msra.mxu0 0.0
  %1599 = vmatpush.msra.mxu0 0.0
  %1600 = vmatpush.msra.mxu0 0.0
  %1601 = vmatpush.msra.mxu0 0.0
  %1602 = vmatpush.msra.mxu0 0.0
  %1603 = vmatpush.msra.mxu0 %v1559
  %1604 = vmatpush.msra.mxu0 %v1558
  %1605 = vmatmul.f32.gmra.mxu0 %v1566
  %v1606 = vpop.f32.mrf.mxu0
  %v1607 = vadd.f32 %v1562, %v1606
  %1608 = vmatmul.f32.gmra.mxu0 %v1569
  %v1609 = vpop.f32.mrf.mxu0
  %v1610 = vadd.f32 %v1562, %v1609
  %1611 = vmatmul.f32.gmra.mxu0 %v1572
  %v1612 = vpop.f32.mrf.mxu0
  %v1613 = vadd.f32 %v1562, %v1612
  %1614 = vmatmul.f32.gmra.mxu0 %v1575
  %v1615 = vpop.f32.mrf.mxu0
  %v1616 = vadd.f32 %v1562, %v1615
  %1617 = vmatmul.f32.gmra.mxu0 %v1578
  %v1618 = vpop.f32.mrf.mxu0
  %v1619 = vadd.f32 %v1562, %v1618
  %1620 = vmatmul.f32.gmra.mxu0 %v1581
  %v1621 = vpop.f32.mrf.mxu0
  %v1622 = vadd.f32 %v1562, %v1621
  %1623 = vmatmul.f32.gmra.mxu0 %v1584
  %v1624 = vpop.f32.mrf.mxu0
  %v1625 = vadd.f32 %v1562, %v1624
  %1626 = vmatmul.f32.gmra.mxu0 %v1587
  %v1627 = vpop.f32.mrf.mxu0
  %v1628 = vadd.f32 %v1562, %v1627
  %1629 = vdwg.mxu0
  %v1630 = vsel %vm108, %v1607, -inf
  %1631 = vmax.xlane.f32.xlu0 %v1630
  %v1632 = vpop.xlane.xlu0 %1631
  %v1633 = vsel %vm108, %v1610, -inf
  %1634 = vmax.xlane.f32.xlu0 %v1633
  %v1635 = vpop.xlane.xlu0 %1634
  %v1636 = vsel %vm108, %v1613, -inf
  %1637 = vmax.xlane.f32.xlu0 %v1636
  %v1638 = vpop.xlane.xlu0 %1637
  %v1639 = vsel %vm108, %v1616, -inf
  %1640 = vmax.xlane.f32.xlu0 %v1639
  %v1641 = vpop.xlane.xlu0 %1640
  %v1642 = vsel %vm108, %v1619, -inf
  %1643 = vmax.xlane.f32.xlu0 %v1642
  %v1644 = vpop.xlane.xlu0 %1643
  %v1645 = vsel %vm108, %v1622, -inf
  %1646 = vmax.xlane.f32.xlu0 %v1645
  %v1647 = vpop.xlane.xlu0 %1646
  %v1648 = vsel %vm108, %v1625, -inf
  %1649 = vmax.xlane.f32.xlu0 %v1648
  %v1650 = vpop.xlane.xlu0 %1649
  %v1651 = vsel %vm108, %v1628, -inf
  %1652 = vmax.xlane.f32.xlu0 %v1651
  %v1653 = vpop.xlane.xlu0 %1652
  %v1654 = vsub.f32 %v1607, %v1632
  %v1655 = vsub.f32 %v1610, %v1635
  %v1656 = vsub.f32 %v1613, %v1638
  %v1657 = vsub.f32 %v1616, %v1641
  %v1658 = vsub.f32 %v1619, %v1644
  %v1659 = vsub.f32 %v1622, %v1647
  %v1660 = vsub.f32 %v1625, %v1650
  %v1661 = vsub.f32 %v1628, %v1653
  %v1662 = vmul.f32 %v1654, 1.442695
  %v1663 = vpow.pop %v1662
  %v1664 = vmul.f32 %v1655, 1.442695
  %v1665 = vpow.pop %v1664
  %v1666 = vmul.f32 %v1656, 1.442695
  %v1667 = vpow.pop %v1666
  %v1668 = vmul.f32 %v1657, 1.442695
  %v1669 = vpow.pop %v1668
  %v1670 = vmul.f32 %v1658, 1.442695
  %v1671 = vpow.pop %v1670
  %v1672 = vmul.f32 %v1659, 1.442695
  %v1673 = vpow.pop %v1672
  %v1674 = vmul.f32 %v1660, 1.442695
  %v1675 = vpow.pop %v1674
  %v1676 = vmul.f32 %v1661, 1.442695
  %v1677 = vpow.pop %v1676
  %v1678 = vsel %vm108, %v1663, 0.0
  %1679 = vadd.xlane.f32.xlu0 %v1678
  %v1680 = vpop.xlane.xlu0 %1679
  %v1681 = vsel %vm108, %v1665, 0.0
  %1682 = vadd.xlane.f32.xlu0 %v1681
  %v1683 = vpop.xlane.xlu0 %1682
  %v1684 = vsel %vm108, %v1667, 0.0
  %1685 = vadd.xlane.f32.xlu0 %v1684
  %v1686 = vpop.xlane.xlu0 %1685
  %v1687 = vsel %vm108, %v1669, 0.0
  %1688 = vadd.xlane.f32.xlu0 %v1687
  %v1689 = vpop.xlane.xlu0 %1688
  %v1690 = vsel %vm108, %v1671, 0.0
  %1691 = vadd.xlane.f32.xlu0 %v1690
  %v1692 = vpop.xlane.xlu0 %1691
  %v1693 = vsel %vm108, %v1673, 0.0
  %1694 = vadd.xlane.f32.xlu0 %v1693
  %v1695 = vpop.xlane.xlu0 %1694
  %v1696 = vsel %vm108, %v1675, 0.0
  %1697 = vadd.xlane.f32.xlu0 %v1696
  %v1698 = vpop.xlane.xlu0 %1697
  %v1699 = vsel %vm108, %v1677, 0.0
  %1700 = vadd.xlane.f32.xlu0 %v1699
  %v1701 = vpop.xlane.xlu0 %1700
  %v1702 = vlog2.pop %v1680
  %v1703 = vmul.f32 %v1702, 0.6931472
  %v1704 = vlog2.pop %v1683
  %v1705 = vmul.f32 %v1704, 0.6931472
  %v1706 = vlog2.pop %v1686
  %v1707 = vmul.f32 %v1706, 0.6931472
  %v1708 = vlog2.pop %v1689
  %v1709 = vmul.f32 %v1708, 0.6931472
  %v1710 = vlog2.pop %v1692
  %v1711 = vmul.f32 %v1710, 0.6931472
  %v1712 = vlog2.pop %v1695
  %v1713 = vmul.f32 %v1712, 0.6931472
  %v1714 = vlog2.pop %v1698
  %v1715 = vmul.f32 %v1714, 0.6931472
  %v1716 = vlog2.pop %v1701
  %v1717 = vmul.f32 %v1716, 0.6931472
  %v1718 = vsub.f32 %v1654, %v1703
  %v1719 = vsub.f32 %v1655, %v1705
  %v1720 = vsub.f32 %v1656, %v1707
  %v1721 = vsub.f32 %v1657, %v1709
  %v1722 = vsub.f32 %v1658, %v1711
  %v1723 = vsub.f32 %v1659, %v1713
  %v1724 = vsub.f32 %v1660, %v1715
  %v1725 = vsub.f32 %v1661, %v1717
  %1726 = vst.msk [vmem:[%s14] sm:$0xff] %vm108, %v1718
  %1727 = vst.msk [vmem:[%s14 + $0x8] sm:$0xff] %vm108, %v1719
  %1728 = vst.msk [vmem:[%s14 + $0x10] sm:$0xff] %vm108, %v1720
  %1729 = vst.msk [vmem:[%s14 + $0x18] sm:$0xff] %vm108, %v1721
  %1730 = vst.msk [vmem:[%s14 + $0x20] sm:$0xff] %vm108, %v1722
  %1731 = vst.msk [vmem:[%s14 + $0x28] sm:$0xff] %vm108, %v1723
  %1732 = vst.msk [vmem:[%s14 + $0x30] sm:$0xff] %vm108, %v1724
  %1733 = vst.msk [vmem:[%s14 + $0x38] sm:$0xff] %vm108, %v1725
  // Predicated region
  $region58: #{dummy_decoder_forward.1} parent=0 // pred_check
    _
  $region59: #{dummy_decoder_forward.1} parent=0 // pred_check_branch
    %1735 = sbr.rel (0) target = $region61
  $region60: #{dummy_decoder_forward.1} parent=0 // pred_region
    _
  $region61: #{dummy_decoder_forward.1} parent=0 // pred_fallthru
    _
  // Predicated region
  $region62: #{dummy_decoder_forward.1} parent=0 // pred_check
    _
  $region63: #{dummy_decoder_forward.1} parent=0 // pred_check_branch
    %1737 = sbr.rel (0) target = $region65
  $region64: #{dummy_decoder_forward.1} parent=0 // pred_region
    _
  $region65: #{dummy_decoder_forward.1} parent=0 // pred_fallthru
    _
  // Predicated region
  $region66: #{dummy_decoder_forward.1} parent=0 // pred_check
    _
  $region67: #{dummy_decoder_forward.1} parent=0 // pred_check_branch
    %1739 = sbr.rel (0) target = $region69
  $region68: #{dummy_decoder_forward.1} parent=0 // pred_region
    _
  $region69: #{dummy_decoder_forward.1} parent=0 // pred_fallthru
    _
  // Predicated region
  $region70: #{dummy_decoder_forward.1} parent=0 // pred_check
    _
  $region71: #{dummy_decoder_forward.1} parent=0 // pred_check_branch
    %1741 = sbr.rel (0) target = $region73
  $region72: #{dummy_decoder_forward.1} parent=0 // pred_region
    _
  $region73: #{dummy_decoder_forward.1} parent=0 // pred_fallthru
    _
  // Predicated region
  $region74: #{dummy_decoder_forward.1} parent=0 // pred_check
    _
  $region75: #{dummy_decoder_forward.1} parent=0 // pred_check_branch
    %1743 = sbr.rel (0) target = $region77
  $region76: #{dummy_decoder_forward.1} parent=0 // pred_region
    _
  $region77: #{dummy_decoder_forward.1} parent=0 // pred_fallthru
    _
  // Predicated region
  $region78: #{dummy_decoder_forward.1} parent=0 // pred_check
    _
  $region79: #{dummy_decoder_forward.1} parent=0 // pred_check_branch
    %1745 = sbr.rel (0) target = $region81
  $region80: #{dummy_decoder_forward.1} parent=0 // pred_region
    _
  $region81: #{dummy_decoder_forward.1} parent=0 // pred_fallthru
    _

</llo_original>
